<compile_context>
chip_gen: v6e
topology: v6e:2x2x1
jax: 0.10.0
libtpu: 0.0.40
codegen_flags: <defaults>
</compile_context>

<pallas_src>
import math
import warnings
from functools import partial

import jax
import jax.numpy as jnp
from jax import lax
from jax.experimental import pallas as pl
from jax.experimental.pallas import tpu as pltpu

warnings.filterwarnings("ignore", message="Some donated buffers were not usable")

_LANE = 128
_SUBLANE = 8


def _round_up(x, m):
    return ((x + m - 1) // m) * m


def _pad2d(a, rows, cols):
    r, c = a.shape
    if r == rows and c == cols:
        return a
    return jnp.pad(a, ((0, rows - r), (0, cols - c)))


def _vmem_limit_bytes(est):
    # footprint-derived limit; capped so it stays comfortable on v7x (64 MiB/TC)
    return int(min(48 << 20, max(24 << 20, int(est * 1.5) + (2 << 20))))


def _padded_m(m):
    return _round_up(max(m, _SUBLANE), _SUBLANE if m <= 1024 else _LANE)


def _choose_tm(mp, tk, coutp):
    # Largest M tile that (a) divides Mp exactly, (b) keeps double-buffered X +
    # f32 membrane/spike tiles under ~20 MiB, (c) leaves >=2 tiles when possible
    # so the "parallel" axis can shard across v7x's two TensorCores.
    budget = 20 << 20
    per_row = 4 * tk + 20 * coutp
    cap = max(_SUBLANE, (budget // max(per_row, 1)) // _SUBLANE * _SUBLANE)
    if mp <= cap:
        if mp >= 256 and (mp // 2) % _SUBLANE == 0:
            return mp // 2
        return mp
    for cand in (1024, 512, 384, 256, 128, 64, 32, 16, 8):
        if cand <= cap and mp % cand == 0:
            return cand
    return _SUBLANE


def _choose_k_tiling(k, coutp):
    # Keep the whole (Kp, CoutP) weight VMEM-resident whenever it fits comfortably
    # (x2 for double-buffering); otherwise tile K with minimal padding.
    kp = _round_up(k, _LANE)
    if 2 * kp * coutp * 2 <= 12 << 20:
        return kp, kp
    best_kp, best_tk = None, None
    for tk in (512, 256):
        kpp = _round_up(k, tk)
        if best_kp is None or kpp < best_kp:
            best_kp, best_tk = kpp, tk
    return best_kp, best_tk


def _conv_geom(x_shape, kh, kw, padding):
    n, cin, h, w = x_shape
    hp, wp = h + 2 * padding, w + 2 * padding
    ho, wo = hp - kh + 1, wp - kw + 1
    m2 = _round_up(n * wp, _SUBLANE)            # output rows per grid step (padded width)
    nwp_pad = _round_up(m2 + kw - 1, _SUBLANE)  # input row length incl. tap halo
    return n, cin, hp, wp, ho, wo, m2, nwp_pad


# --------------------------------------------------------------------------
# Fused conv kernels (no im2col): grid over output rows, taps gathered in-kernel
# --------------------------------------------------------------------------
def _pallas_conv_spike(params, xt, w3, b_row, mem, *, kh, kw, cin, ho, m2,
                       nwp_pad, coutp):
    def kernel(*refs):
        params_ref = refs[0]
        xrefs = refs[1:1 + kh]
        w_ref, b_ref, mem_ref, spike_ref, mem_out_ref = refs[1 + kh:]
        acc = mem_ref[0] + b_ref[...]                      # f32, bias(+shift) folded
        for i in range(kh):
            for j in range(kw):
                acc = acc + jnp.dot(xrefs[i][0, j:j + m2, :], w_ref[i * kw + j],
                                    preferred_element_type=jnp.float32)
        thr = params_ref[0]
        amp = params_ref[1]                                # outw * threshold
        spike = jnp.where(acc >= thr, amp, jnp.float32(0.0))
        spike_ref[0] = spike.astype(spike_ref.dtype)       # bf16, values in {0, amp}
        mem_out_ref[0] = acc - spike                       # reset-by-subtraction, f32

    x_specs = [pl.BlockSpec((1, nwp_pad, cin), (lambda h, r=r: (h + r, 0, 0)))
               for r in range(kh)]
    est = (kh * 2 * _round_up(nwp_pad, 16) * _round_up(cin, _LANE) * 2
           + 2 * kh * kw * _round_up(cin, 16) * coutp * 2
           + 2 * _SUBLANE * coutp * 4
           + 2 * m2 * coutp * (4 + 2 + 4)
           + 2 * m2 * coutp * 4)
    return pl.pallas_call(
        kernel,
        out_shape=(jax.ShapeDtypeStruct((ho, m2, coutp), jnp.bfloat16),
                   jax.ShapeDtypeStruct((ho, m2, coutp), jnp.float32)),
        grid_spec=pltpu.PrefetchScalarGridSpec(
            num_scalar_prefetch=0,
            grid=(ho,),
            in_specs=([pl.BlockSpec(memory_space=pltpu.MemorySpace.SMEM)]  # [thr, amp]
                      + x_specs
                      + [pl.BlockSpec((kh * kw, cin, coutp), lambda h: (0, 0, 0)),
                         pl.BlockSpec((1, coutp), lambda h: (0, 0)),
                         pl.BlockSpec((1, m2, coutp), lambda h: (h, 0, 0))]),
            out_specs=(pl.BlockSpec((1, m2, coutp), lambda h: (h, 0, 0)),
                       pl.BlockSpec((1, m2, coutp), lambda h: (h, 0, 0))),
        ),
        input_output_aliases={kh + 3: 1},      # membrane updated in place
        compiler_params=pltpu.CompilerParams(
            dimension_semantics=("parallel",),
            vmem_limit_bytes=_vmem_limit_bytes(est)),
    )(params, *([xt] * kh), w3, b_row, mem)


def _pallas_conv_ann(xt, w3, b_row, *, kh, kw, cin, ho, m2, nwp_pad, coutp):
    def kernel(*refs):
        xrefs = refs[:kh]
        w_ref, b_ref, o_ref = refs[kh:]
        acc = jnp.zeros((m2, coutp), jnp.float32) + b_ref[...]
        for i in range(kh):
            for j in range(kw):
                acc = acc + jnp.dot(xrefs[i][0, j:j + m2, :], w_ref[i * kw + j],
                                    preferred_element_type=jnp.float32)
        o_ref[0] = acc

    x_specs = [pl.BlockSpec((1, nwp_pad, cin), (lambda h, r=r: (h + r, 0, 0)))
               for r in range(kh)]
    est = (kh * 2 * _round_up(nwp_pad, 16) * _round_up(cin, _LANE) * 2
           + 2 * kh * kw * _round_up(cin, 16) * coutp * 2
           + 2 * _SUBLANE * coutp * 4
           + 2 * m2 * coutp * 4
           + 2 * m2 * coutp * 4)
    return pl.pallas_call(
        kernel,
        out_shape=jax.ShapeDtypeStruct((ho, m2, coutp), jnp.float32),
        grid_spec=pltpu.PrefetchScalarGridSpec(
            num_scalar_prefetch=0,
            grid=(ho,),
            in_specs=(x_specs
                      + [pl.BlockSpec((kh * kw, cin, coutp), lambda h: (0, 0, 0)),
                         pl.BlockSpec((1, coutp), lambda h: (0, 0))]),
            out_specs=pl.BlockSpec((1, m2, coutp), lambda h: (h, 0, 0)),
        ),
        compiler_params=pltpu.CompilerParams(
            dimension_semantics=("parallel",),
            vmem_limit_bytes=_vmem_limit_bytes(est)),
    )(*([xt] * kh), w3, b_row)


# --------------------------------------------------------------------------
# Linear kernels (rows x resident weight), output block is the accumulator
# --------------------------------------------------------------------------
def _spike_linear_kernel(params_ref, x_ref, w_ref, b_ref, mem_ref,
                         spike_ref, mem_out_ref):
    k = pl.program_id(1)

    @pl.when(k == 0)
    def _():
        mem_out_ref[...] = mem_ref[...] + b_ref[...]

    mem_out_ref[...] += lax.dot_general(
        x_ref[...], w_ref[...], (((1,), (0,)), ((), ())),
        preferred_element_type=jnp.float32)

    @pl.when(k == pl.num_programs(1) - 1)
    def _():
        thr = params_ref[0]
        amp = params_ref[1]
        mem = mem_out_ref[...]
        spike = jnp.where(mem >= thr, amp, jnp.float32(0.0))
        spike_ref[...] = spike.astype(spike_ref.dtype)
        mem_out_ref[...] = mem - spike


def _ann_linear_kernel(x_ref, w_ref, b_ref, o_ref):
    k = pl.program_id(1)

    @pl.when(k == 0)
    def _():
        o_ref[...] = jnp.zeros_like(o_ref) + b_ref[...]

    o_ref[...] += lax.dot_general(
        x_ref[...], w_ref[...], (((1,), (0,)), ((), ())),
        preferred_element_type=jnp.float32)


def _pallas_spike_linear(params, xp, w_kc, b_row, mem, *, tm, tk):
    mp, kp = xp.shape
    coutp = w_kc.shape[1]
    grid = (mp // tm, kp // tk)
    est = (2 * tm * tk * 2 + 2 * tk * coutp * 2 + 2 * _SUBLANE * coutp * 4
           + 2 * tm * coutp * (4 + 2 + 4))
    return pl.pallas_call(
        _spike_linear_kernel,
        out_shape=(jax.ShapeDtypeStruct((mp, coutp), jnp.bfloat16),
                   jax.ShapeDtypeStruct((mp, coutp), jnp.float32)),
        grid_spec=pltpu.PrefetchScalarGridSpec(
            num_scalar_prefetch=0,
            grid=grid,
            in_specs=[pl.BlockSpec(memory_space=pltpu.MemorySpace.SMEM),  # [thr, amp]
                      pl.BlockSpec((tm, tk), lambda i, k: (i, k)),
                      pl.BlockSpec((tk, coutp), lambda i, k: (k, 0)),
                      pl.BlockSpec((1, coutp), lambda i, k: (0, 0)),
                      pl.BlockSpec((tm, coutp), lambda i, k: (i, 0))],
            out_specs=(pl.BlockSpec((tm, coutp), lambda i, k: (i, 0)),
                       pl.BlockSpec((tm, coutp), lambda i, k: (i, 0)))),
        input_output_aliases={4: 1},          # membrane updated in place
        compiler_params=pltpu.CompilerParams(
            dimension_semantics=("parallel", "arbitrary"),
            vmem_limit_bytes=_vmem_limit_bytes(est)),
    )(params, xp, w_kc, b_row, mem)


def _pallas_ann_linear(xp, w_kc, b_row, *, tm, tk):
    mp, kp = xp.shape
    coutp = w_kc.shape[1]
    grid = (mp // tm, kp // tk)
    est = (2 * tm * tk * 2 + 2 * tk * coutp * 2 + 2 * _SUBLANE * coutp * 4
           + 2 * tm * coutp * 4)
    return pl.pallas_call(
        _ann_linear_kernel,
        out_shape=jax.ShapeDtypeStruct((mp, coutp), jnp.float32),
        grid_spec=pltpu.PrefetchScalarGridSpec(
            num_scalar_prefetch=0,
            grid=grid,
            in_specs=[pl.BlockSpec((tm, tk), lambda i, k: (i, k)),
                      pl.BlockSpec((tk, coutp), lambda i, k: (k, 0)),
                      pl.BlockSpec((1, coutp), lambda i, k: (0, 0))],
            out_specs=pl.BlockSpec((tm, coutp), lambda i, k: (i, 0))),
        compiler_params=pltpu.CompilerParams(
            dimension_semantics=("parallel", "arbitrary"),
            vmem_limit_bytes=_vmem_limit_bytes(est)),
    )(xp, w_kc, b_row)


# --------------------------------------------------------------------------
# Jitted per-timestep paths (layout prep + kernel + un-pad, one XLA program)
# --------------------------------------------------------------------------
def _prepare_conv_x(x, padding, nwp_pad):
    x = x.astype(jnp.bfloat16)                        # bf16 BEFORE any layout work
    xp = jnp.pad(x, ((0, 0), (0, 0), (padding, padding), (padding, padding)))
    n, cin, hp, wp = xp.shape
    xt = xp.transpose(2, 0, 3, 1).reshape(hp, n * wp, cin)   # (Hp, N*Wp, Cin)
    return jnp.pad(xt, ((0, 0), (0, nwp_pad - n * wp), (0, 0)))


@partial(jax.jit, static_argnames=("kh", "kw", "padding", "cout", "coutp"),
         donate_argnames=("mem",))
def _conv_spike_forward(x, w3, b_eff, params, mem, *, kh, kw, padding, cout, coutp):
    n, cin, hp, wp, ho, wo, m2, nwp_pad = _conv_geom(x.shape, kh, kw, padding)
    xt = _prepare_conv_x(x, padding, nwp_pad)
    spike_l, mem_new = _pallas_conv_spike(
        params, xt, w3, b_eff, mem,
        kh=kh, kw=kw, cin=cin, ho=ho, m2=m2, nwp_pad=nwp_pad, coutp=coutp)
    s = spike_l[:, :n * wp, :cout].reshape(ho, n, wp, cout)[:, :, :wo, :]
    return s.transpose(1, 3, 0, 2).astype(jnp.float32), mem_new


@partial(jax.jit, static_argnames=("kh", "kw", "padding", "cout", "coutp"))
def _conv_ann_forward(x, w3, b_row, *, kh, kw, padding, cout, coutp):
    n, cin, hp, wp, ho, wo, m2, nwp_pad = _conv_geom(x.shape, kh, kw, padding)
    xt = _prepare_conv_x(x, padding, nwp_pad)
    out = _pallas_conv_ann(xt, w3, b_row, kh=kh, kw=kw, cin=cin, ho=ho,
                           m2=m2, nwp_pad=nwp_pad, coutp=coutp)
    y = out[:, :n * wp, :cout].reshape(ho, n, wp, cout)[:, :, :wo, :]
    return y.transpose(1, 3, 0, 2)


@partial(jax.jit, static_argnames=("cout", "coutp", "kp", "tk"),
         donate_argnames=("mem",))
def _linear_spike_forward(x, w_kc, b_eff, params, mem, *, cout, coutp, kp, tk):
    lead = x.shape[:-1]
    m = int(math.prod(lead))
    mp = _padded_m(m)
    tm = _choose_tm(mp, tk, coutp)
    rows = x.reshape(m, x.shape[-1]).astype(jnp.bfloat16)
    xp = _pad2d(rows, mp, kp)
    spike_rows, mem_new = _pallas_spike_linear(params, xp, w_kc, b_eff, mem,
                                               tm=tm, tk=tk)
    out = spike_rows[:m, :cout].astype(jnp.float32).reshape(lead + (cout,))
    return out, mem_new


@partial(jax.jit, static_argnames=("cout", "coutp", "kp", "tk"))
def _linear_ann_forward(x, w_kc, b_row, *, cout, coutp, kp, tk):
    lead = x.shape[:-1]
    m = int(math.prod(lead))
    mp = _padded_m(m)
    tm = _choose_tm(mp, tk, coutp)
    rows = x.reshape(m, x.shape[-1]).astype(jnp.bfloat16)
    xp = _pad2d(rows, mp, kp)
    out_rows = _pallas_ann_linear(xp, w_kc, b_row, tm=tm, tk=tk)
    return out_rows[:m, :cout].reshape(lead + (cout,))


# --------------------------------------------------------------------------
# Module
# --------------------------------------------------------------------------
class StraightThrough:
    def __call__(self, x):
        return x


class SpikeModulePallas:
    """Pallas port of SpikeModule (wraps a Conv2d[stride=1] or a Linear)."""

    def __init__(self, sim_length, weight, bias=None, stride=1, padding=0,
                 enable_shift=False):
        weight = jnp.asarray(weight, jnp.float32)
        self.is_conv = (weight.ndim == 4)
        if isinstance(stride, (tuple, list)):
            stride = stride[0]
        if isinstance(padding, (tuple, list)):
            padding = padding[0]
        if self.is_conv:
            # TODO(synk): stride != 1 / dilation / groups not implemented
            assert stride == 1
        self.stride = stride
        self.padding = int(padding)
        self.weight = weight
        self.bias = None if bias is None else jnp.asarray(bias, jnp.float32)
        self.org_weight = weight
        self.org_bias = self.bias
        self.threshold = None
        self.outw = 1.0
        self.input_shift = None   # TODO(synk): input_shift branch not implemented
        self.mem_pot_init = 0
        self.use_spike = False
        self.enable_shift = enable_shift
        self.sim_length = sim_length
        self.cur_t = 0
        self.relu = StraightThrough()

        self.cout = int(weight.shape[0])
        self._coutp = _round_up(self.cout, _LANE)
        if self.is_conv:
            self.cin = int(weight.shape[1])
            self.kh = int(weight.shape[2])
            self.kw = int(weight.shape[3])
            self._w_spike = self._prep_conv_weight(self.weight)
            self._w_ann = self._prep_conv_weight(self.org_weight)
        else:
            self.k_in = int(weight.shape[1])
            self._kp, self._tk = _choose_k_tiling(self.k_in, self._coutp)
            self._w_spike = self._prep_linear_weight(self.weight)
            self._w_ann = self._prep_linear_weight(self.org_weight)

        b = self.org_bias if self.org_bias is not None else jnp.zeros(
            (self.cout,), jnp.float32)
        self._b_ann = _pad2d(b.reshape(1, self.cout), 1, self._coutp)

        # cached spike-path constants (rebuilt only when threshold/outw change)
        self._const_key = None
        self._params = None
        self._b_eff = None

        # membrane state kept in kernel layout across timesteps.  Padded rows /
        # channels beyond the real output accumulate garbage but are sliced off
        # whenever mem_pot / spikes are read in the module-facing layout.
        self._mem_state = None    # device array in kernel layout, or None
        self._mem_layout = None
        self._mem_pending = 0     # scalar / module-layout value used to build state

    # ---- one-time weight prep ----
    def _prep_conv_weight(self, w):
        wt = jnp.asarray(w, jnp.float32).transpose(2, 3, 1, 0)     # (KH, KW, Cin, Cout)
        wt = wt.reshape(self.kh * self.kw, self.cin, self.cout)
        if self._coutp != self.cout:
            wt = jnp.pad(wt, ((0, 0), (0, 0), (0, self._coutp - self.cout)))
        return wt.astype(jnp.bfloat16)

    def _prep_linear_weight(self, w):
        w2 = jnp.asarray(w, jnp.float32).reshape(self.cout, -1).T  # (K, Cout)
        return _pad2d(w2, self._kp, self._coutp).astype(jnp.bfloat16)

    # ---- cached spike constants ----
    def _spike_consts(self):
        thr = float(self.threshold)
        key = (thr, float(self.outw), bool(self.enable_shift is True), self.sim_length)
        if self._const_key != key:
            shift = thr * 0.5 / self.sim_length if self.enable_shift is True else 0.0
            b = self.bias if self.bias is not None else jnp.zeros(
                (self.cout,), jnp.float32)
            self._b_eff = _pad2d((b + shift).reshape(1, self.cout).astype(jnp.float32),
                                 1, self._coutp)
            self._params = jnp.asarray([thr, float(self.outw) * thr], jnp.float32)
            self._const_key = key
        return self._params, self._b_eff

    # ---- membrane potential (module-facing layout) ----
    @property
    def mem_pot(self):
        if self._mem_state is None:
            return self._mem_pending
        if self._mem_layout[0] == "conv":
            _, n, wp, ho, wo = self._mem_layout
            m = self._mem_state[:, :n * wp, :self.cout].reshape(ho, n, wp, self.cout)
            return m[:, :, :wo, :].transpose(1, 3, 0, 2)
        _, lead, m = self._mem_layout
        return self._mem_state[:m, :self.cout].reshape(lead + (self.cout,))

    @mem_pot.setter
    def mem_pot(self, value):
        self._mem_state = None
        self._mem_layout = None
        self._mem_pending = value

    def init_membrane_potential(self):
        self.mem_pot = (self.mem_pot_init if isinstance(self.mem_pot_init, int)
                        else jnp.array(self.mem_pot_init))
        self.cur_t = 0

    def _conv_mem_internal(self, geom):
        n, cin, hp, wp, ho, wo, m2, nwp_pad = geom
        layout = ("conv", n, wp, ho, wo)
        if self._mem_state is not None:
            if (self._mem_layout != layout
                    or self._mem_state.shape != (ho, m2, self._coutp)):
                raise ValueError(
                    "membrane potential layout mismatch (input shape changed); "
                    "call init_membrane_potential() first")
            return self._mem_state
        v = self._mem_pending
        if isinstance(v, (int, float)) or (hasattr(v, "ndim") and v.ndim == 0):
            mem = jnp.full((ho, m2, self._coutp), float(v), jnp.float32)
        else:
            v = jnp.asarray(v, jnp.float32)                        # (N, Cout, Ho, Wo)
            vt = v.transpose(2, 0, 3, 1)                           # (Ho, N, Wo, Cout)
            vt = jnp.pad(vt, ((0, 0), (0, 0), (0, wp - wo),
                              (0, self._coutp - self.cout)))
            vt = vt.reshape(ho, n * wp, self._coutp)
            mem = jnp.pad(vt, ((0, 0), (0, m2 - n * wp), (0, 0)))
        self._mem_layout = layout
        return mem

    def _linear_mem_internal(self, lead, m, mp):
        layout = ("linear", tuple(lead), m)
        if self._mem_state is not None:
            if (self._mem_layout != layout
                    or self._mem_state.shape != (mp, self._coutp)):
                raise ValueError(
                    "membrane potential layout mismatch (input shape changed); "
                    "call init_membrane_potential() first")
            return self._mem_state
        v = self._mem_pending
        if isinstance(v, (int, float)) or (hasattr(v, "ndim") and v.ndim == 0):
            mem = jnp.full((mp, self._coutp), float(v), jnp.float32)
        else:
            v = jnp.asarray(v, jnp.float32).reshape(m, self.cout)
            mem = _pad2d(v, mp, self._coutp)
        self._mem_layout = layout
        return mem

    # ---- forward ----
    def __call__(self, x):
        x = jnp.asarray(x)
        if self.use_spike:
            self.cur_t += 1
            # TODO(synk): input_shift branch not implemented (always None in the
            # reference __init__).
            params, b_eff = self._spike_consts()
            if self.is_conv:
                geom = _conv_geom(x.shape, self.kh, self.kw, self.padding)
                mem = self._conv_mem_internal(geom)
                spike, mem_new = _conv_spike_forward(
                    x, self._w_spike, b_eff, params, mem,
                    kh=self.kh, kw=self.kw, padding=self.padding,
                    cout=self.cout, coutp=self._coutp)
            else:
                lead = x.shape[:-1]
                m = int(math.prod(lead))
                mp = _padded_m(m)
                mem = self._linear_mem_internal(lead, m, mp)
                spike, mem_new = _linear_spike_forward(
                    x, self._w_spike, b_eff, params, mem,
                    cout=self.cout, coutp=self._coutp, kp=self._kp, tk=self._tk)
            self._mem_state = mem_new
            return spike
        # ANN path: fwd_func(org_weight, org_bias) + StraightThrough
        # TODO(synk): rows-in/rows-out fast path for chained SpikeModules (skip the
        # NCHW <-> kernel-layout transposes at layer boundaries each timestep).
        if self.is_conv:
            return self.relu(_conv_ann_forward(
                x, self._w_ann, self._b_ann,
                kh=self.kh, kw=self.kw, padding=self.padding,
                cout=self.cout, coutp=self._coutp))
        return self.relu(_linear_ann_forward(
            x, self._w_ann, self._b_ann,
            cout=self.cout, coutp=self._coutp, kp=self._kp, tk=self._tk))


# --------------------------------------------------------------------------
# Reference (plain JAX) and test driver
# --------------------------------------------------------------------------
def conv_ref(x, w, b, padding):
    out = lax.conv_general_dilated(
        x, w, window_strides=(1, 1),
        padding=((padding, padding), (padding, padding)),
        dimension_numbers=("NCHW", "OIHW", "NCHW"),
        precision=lax.Precision.HIGHEST)
    return out + b[None, :, None, None]


if __name__ == "__main__":
    key = jax.random.PRNGKey(0)
    kx, kw_, kb, kxl, kwl, kbl = jax.random.split(key, 6)

    # ---------------- Conv2d-wrapped SpikeModule ----------------
    N, Cin, H, W = 2, 4, 16, 16
    Cout, KH, KW = 8, 3, 3
    x = jax.random.normal(kx, (N, Cin, H, W), jnp.float32)
    weight = 0.3 * jax.random.normal(kw_, (Cout, Cin, KH, KW), jnp.float32)
    bias = 0.1 * jax.random.normal(kb, (Cout,), jnp.float32)

    sim_length = 8
    mod = SpikeModulePallas(sim_length, weight, bias, stride=1, padding=1,
                            enable_shift=False)

    # bf16-rounded reference: kernel streams X/W in bf16 with f32 accumulation
    xb = x.astype(jnp.bfloat16).astype(jnp.float32)
    wb = weight.astype(jnp.bfloat16).astype(jnp.float32)

    # ---- ANN (non-spike) path ----
    y_ann = mod(x)
    ref_ann = conv_ref(xb, wb, bias, 1)
    assert y_ann.shape == (N, Cout, H, W)
    assert bool(jnp.allclose(y_ann, ref_ann, atol=2e-3, rtol=2e-3)), "ANN conv mismatch"

    # ---- Spike (SNN) path ----
    mod.use_spike = True
    mod.threshold = 0.5
    mod.init_membrane_potential()

    thr, outw = 0.5, 1.0
    spike1 = mod(x)   # first timestep (mem starts at 0, enable_shift=False)
    ref_pre = ref_ann
    ref_spike1 = jnp.where(ref_pre >= thr, outw * thr, 0.0)
    ref_mem1 = ref_pre - ref_spike1
    mem1 = mod.mem_pot
    near = jnp.abs(ref_pre - thr) < 5e-3   # ignore knife-edge threshold decisions
    assert spike1.shape == (N, Cout, H, W)
    assert bool(jnp.all(jnp.where(near, True, jnp.abs(spike1 - ref_spike1) < 5e-3)))
    assert bool(jnp.all(jnp.where(near, True, jnp.abs(mem1 - ref_mem1) < 5e-3)))

    # a couple more timesteps exercise the persistent (donated/aliased) membrane
    out = spike1
    for t in range(2):
        out = mod(x * (0.5 + 0.25 * t))
    jax.block_until_ready((out, mod.mem_pot))
    assert mod.cur_t == 3

    # ---------------- Linear-wrapped SpikeModule ----------------
    B, Kin, Kout = 16, 40, 24
    xl = jax.random.normal(kxl, (B, Kin), jnp.float32)
    wl = 0.3 * jax.random.normal(kwl, (Kout, Kin), jnp.float32)
    bl = 0.1 * jax.random.normal(kbl, (Kout,), jnp.float32)
    lmod = SpikeModulePallas(sim_length, wl, bl)

    xlb = xl.astype(jnp.bfloat16).astype(jnp.float32)
    wlb = wl.astype(jnp.bfloat16).astype(jnp.float32)
    ref_lin = jnp.dot(xlb, wlb.T, precision=lax.Precision.HIGHEST) + bl

    y_lin = lmod(xl)
    assert y_lin.shape == (B, Kout)
    assert bool(jnp.allclose(y_lin, ref_lin, atol=2e-3, rtol=2e-3)), "ANN linear mismatch"

    lmod.use_spike = True
    lmod.threshold = 0.5
    lmod.init_membrane_potential()
    s_lin = lmod(xl)
    ref_spike_lin = jnp.where(ref_lin >= 0.5, 0.5, 0.0)
    near_lin = jnp.abs(ref_lin - 0.5) < 5e-3
    assert bool(jnp.all(jnp.where(near_lin, True,
                                  jnp.abs(s_lin - ref_spike_lin) < 5e-3)))
    jax.block_until_ready((s_lin, lmod.mem_pot))

    print("KERNEL_OK")
</pallas_src>

<mosaic_0001>
module attributes {stable_mosaic.version = 11 : i64} {
  func.func @kernel(%arg0: i32, %arg1: memref<1x48x4xbf16, #tpu.memory_space<vmem>>, %arg2: memref<1x48x4xbf16, #tpu.memory_space<vmem>>, %arg3: memref<1x48x4xbf16, #tpu.memory_space<vmem>>, %arg4: memref<9x4x128xbf16, #tpu.memory_space<vmem>>, %arg5: memref<1x128xf32, #tpu.memory_space<vmem>>, %arg6: memref<1x40x128xf32, #tpu.memory_space<vmem>>) attributes {dimension_semantics = [#tpu.dimension_semantics<parallel>], iteration_bounds = array<i64: 16>, scalar_prefetch = 0 : i64, scratch_operands = 0 : i64, tpu.core_type = #tpu.core_type<tc>, window_params = [{transform_indices = @transform_0, window_bounds = array<i64: 1, 48, 4>}, {transform_indices = @transform_1, window_bounds = array<i64: 1, 48, 4>}, {transform_indices = @transform_2, window_bounds = array<i64: 1, 48, 4>}, {pipeline_mode = #tpu.pipeline_mode<synchronous>, transform_indices = @transform_3, window_bounds = array<i64: 9, 4, 128>}, {pipeline_mode = #tpu.pipeline_mode<synchronous>, transform_indices = @transform_4, window_bounds = array<i64: 1, 128>}, {transform_indices = @transform_5, window_bounds = array<i64: 1, 40, 128>}]} {
    %cst = arith.constant 0.000000e+00 : f32
    %0 = vector.broadcast %cst : f32 to vector<40x128xf32>
    %c0 = arith.constant 0 : index
    %c0_0 = arith.constant 0 : index
    %1 = vector.load %arg5[%c0, %c0_0] : memref<1x128xf32, #tpu.memory_space<vmem>>, vector<1x128xf32>
    %2 = vector.broadcast %1 : vector<1x128xf32> to vector<40x128xf32>
    %3 = arith.addf %0, %2 : vector<40x128xf32>
    %c0_1 = arith.constant 0 : index
    %c0_2 = arith.constant 0 : index
    %c0_3 = arith.constant 0 : index
    %4 = vector.load %arg1[%c0_1, %c0_2, %c0_3] : memref<1x48x4xbf16, #tpu.memory_space<vmem>>, vector<1x40x4xbf16>
    %5 = vector.shape_cast %4 : vector<1x40x4xbf16> to vector<40x4xbf16>
    %c0_4 = arith.constant 0 : index
    %c0_5 = arith.constant 0 : index
    %c0_6 = arith.constant 0 : index
    %6 = vector.load %arg4[%c0_4, %c0_5, %c0_6] : memref<9x4x128xbf16, #tpu.memory_space<vmem>>, vector<1x4x128xbf16>
    %7 = vector.shape_cast %6 : vector<1x4x128xbf16> to vector<4x128xbf16>
    %cst_7 = arith.constant dense<0.000000e+00> : vector<40x128xf32>
    %8 = tpu.matmul %5, %7, %cst_7 {dimension_numbers = #tpu.dot_dimension_numbers<[1], [0], [0], [1], [0, 0, 1, 1], [], []>} : vector<40x4xbf16>, vector<4x128xbf16>, vector<40x128xf32> -> vector<40x128xf32>
    %9 = arith.addf %3, %8 : vector<40x128xf32>
    %c0_8 = arith.constant 0 : index
    %c1 = arith.constant 1 : index
    %c0_9 = arith.constant 0 : index
    %10 = vector.load %arg1[%c0_8, %c1, %c0_9] : memref<1x48x4xbf16, #tpu.memory_space<vmem>>, vector<1x40x4xbf16>
    %11 = vector.shape_cast %10 : vector<1x40x4xbf16> to vector<40x4xbf16>
    %c1_10 = arith.constant 1 : index
    %c0_11 = arith.constant 0 : index
    %c0_12 = arith.constant 0 : index
    %12 = vector.load %arg4[%c1_10, %c0_11, %c0_12] : memref<9x4x128xbf16, #tpu.memory_space<vmem>>, vector<1x4x128xbf16>
    %13 = vector.shape_cast %12 : vector<1x4x128xbf16> to vector<4x128xbf16>
    %cst_13 = arith.constant dense<0.000000e+00> : vector<40x128xf32>
    %14 = tpu.matmul %11, %13, %cst_13 {dimension_numbers = #tpu.dot_dimension_numbers<[1], [0], [0], [1], [0, 0, 1, 1], [], []>} : vector<40x4xbf16>, vector<4x128xbf16>, vector<40x128xf32> -> vector<40x128xf32>
    %15 = arith.addf %9, %14 : vector<40x128xf32>
    %c0_14 = arith.constant 0 : index
    %c2 = arith.constant 2 : index
    %c0_15 = arith.constant 0 : index
    %16 = vector.load %arg1[%c0_14, %c2, %c0_15] : memref<1x48x4xbf16, #tpu.memory_space<vmem>>, vector<1x40x4xbf16>
    %17 = vector.shape_cast %16 : vector<1x40x4xbf16> to vector<40x4xbf16>
    %c2_16 = arith.constant 2 : index
    %c0_17 = arith.constant 0 : index
    %c0_18 = arith.constant 0 : index
    %18 = vector.load %arg4[%c2_16, %c0_17, %c0_18] : memref<9x4x128xbf16, #tpu.memory_space<vmem>>, vector<1x4x128xbf16>
    %19 = vector.shape_cast %18 : vector<1x4x128xbf16> to vector<4x128xbf16>
    %cst_19 = arith.constant dense<0.000000e+00> : vector<40x128xf32>
    %20 = tpu.matmul %17, %19, %cst_19 {dimension_numbers = #tpu.dot_dimension_numbers<[1], [0], [0], [1], [0, 0, 1, 1], [], []>} : vector<40x4xbf16>, vector<4x128xbf16>, vector<40x128xf32> -> vector<40x128xf32>
    %21 = arith.addf %15, %20 : vector<40x128xf32>
    %c0_20 = arith.constant 0 : index
    %c0_21 = arith.constant 0 : index
    %c0_22 = arith.constant 0 : index
    %22 = vector.load %arg2[%c0_20, %c0_21, %c0_22] : memref<1x48x4xbf16, #tpu.memory_space<vmem>>, vector<1x40x4xbf16>
    %23 = vector.shape_cast %22 : vector<1x40x4xbf16> to vector<40x4xbf16>
    %c3 = arith.constant 3 : index
    %c0_23 = arith.constant 0 : index
    %c0_24 = arith.constant 0 : index
    %24 = vector.load %arg4[%c3, %c0_23, %c0_24] : memref<9x4x128xbf16, #tpu.memory_space<vmem>>, vector<1x4x128xbf16>
    %25 = vector.shape_cast %24 : vector<1x4x128xbf16> to vector<4x128xbf16>
    %cst_25 = arith.constant dense<0.000000e+00> : vector<40x128xf32>
    %26 = tpu.matmul %23, %25, %cst_25 {dimension_numbers = #tpu.dot_dimension_numbers<[1], [0], [0], [1], [0, 0, 1, 1], [], []>} : vector<40x4xbf16>, vector<4x128xbf16>, vector<40x128xf32> -> vector<40x128xf32>
    %27 = arith.addf %21, %26 : vector<40x128xf32>
    %c0_26 = arith.constant 0 : index
    %c1_27 = arith.constant 1 : index
    %c0_28 = arith.constant 0 : index
    %28 = vector.load %arg2[%c0_26, %c1_27, %c0_28] : memref<1x48x4xbf16, #tpu.memory_space<vmem>>, vector<1x40x4xbf16>
    %29 = vector.shape_cast %28 : vector<1x40x4xbf16> to vector<40x4xbf16>
    %c4 = arith.constant 4 : index
    %c0_29 = arith.constant 0 : index
    %c0_30 = arith.constant 0 : index
    %30 = vector.load %arg4[%c4, %c0_29, %c0_30] : memref<9x4x128xbf16, #tpu.memory_space<vmem>>, vector<1x4x128xbf16>
    %31 = vector.shape_cast %30 : vector<1x4x128xbf16> to vector<4x128xbf16>
    %cst_31 = arith.constant dense<0.000000e+00> : vector<40x128xf32>
    %32 = tpu.matmul %29, %31, %cst_31 {dimension_numbers = #tpu.dot_dimension_numbers<[1], [0], [0], [1], [0, 0, 1, 1], [], []>} : vector<40x4xbf16>, vector<4x128xbf16>, vector<40x128xf32> -> vector<40x128xf32>
    %33 = arith.addf %27, %32 : vector<40x128xf32>
    %c0_32 = arith.constant 0 : index
    %c2_33 = arith.constant 2 : index
    %c0_34 = arith.constant 0 : index
    %34 = vector.load %arg2[%c0_32, %c2_33, %c0_34] : memref<1x48x4xbf16, #tpu.memory_space<vmem>>, vector<1x40x4xbf16>
    %35 = vector.shape_cast %34 : vector<1x40x4xbf16> to vector<40x4xbf16>
    %c5 = arith.constant 5 : index
    %c0_35 = arith.constant 0 : index
    %c0_36 = arith.constant 0 : index
    %36 = vector.load %arg4[%c5, %c0_35, %c0_36] : memref<9x4x128xbf16, #tpu.memory_space<vmem>>, vector<1x4x128xbf16>
    %37 = vector.shape_cast %36 : vector<1x4x128xbf16> to vector<4x128xbf16>
    %cst_37 = arith.constant dense<0.000000e+00> : vector<40x128xf32>
    %38 = tpu.matmul %35, %37, %cst_37 {dimension_numbers = #tpu.dot_dimension_numbers<[1], [0], [0], [1], [0, 0, 1, 1], [], []>} : vector<40x4xbf16>, vector<4x128xbf16>, vector<40x128xf32> -> vector<40x128xf32>
    %39 = arith.addf %33, %38 : vector<40x128xf32>
    %c0_38 = arith.constant 0 : index
    %c0_39 = arith.constant 0 : index
    %c0_40 = arith.constant 0 : index
    %40 = vector.load %arg3[%c0_38, %c0_39, %c0_40] : memref<1x48x4xbf16, #tpu.memory_space<vmem>>, vector<1x40x4xbf16>
    %41 = vector.shape_cast %40 : vector<1x40x4xbf16> to vector<40x4xbf16>
    %c6 = arith.constant 6 : index
    %c0_41 = arith.constant 0 : index
    %c0_42 = arith.constant 0 : index
    %42 = vector.load %arg4[%c6, %c0_41, %c0_42] : memref<9x4x128xbf16, #tpu.memory_space<vmem>>, vector<1x4x128xbf16>
    %43 = vector.shape_cast %42 : vector<1x4x128xbf16> to vector<4x128xbf16>
    %cst_43 = arith.constant dense<0.000000e+00> : vector<40x128xf32>
    %44 = tpu.matmul %41, %43, %cst_43 {dimension_numbers = #tpu.dot_dimension_numbers<[1], [0], [0], [1], [0, 0, 1, 1], [], []>} : vector<40x4xbf16>, vector<4x128xbf16>, vector<40x128xf32> -> vector<40x128xf32>
    %45 = arith.addf %39, %44 : vector<40x128xf32>
    %c0_44 = arith.constant 0 : index
    %c1_45 = arith.constant 1 : index
    %c0_46 = arith.constant 0 : index
    %46 = vector.load %arg3[%c0_44, %c1_45, %c0_46] : memref<1x48x4xbf16, #tpu.memory_space<vmem>>, vector<1x40x4xbf16>
    %47 = vector.shape_cast %46 : vector<1x40x4xbf16> to vector<40x4xbf16>
    %c7 = arith.constant 7 : index
    %c0_47 = arith.constant 0 : index
    %c0_48 = arith.constant 0 : index
    %48 = vector.load %arg4[%c7, %c0_47, %c0_48] : memref<9x4x128xbf16, #tpu.memory_space<vmem>>, vector<1x4x128xbf16>
    %49 = vector.shape_cast %48 : vector<1x4x128xbf16> to vector<4x128xbf16>
    %cst_49 = arith.constant dense<0.000000e+00> : vector<40x128xf32>
    %50 = tpu.matmul %47, %49, %cst_49 {dimension_numbers = #tpu.dot_dimension_numbers<[1], [0], [0], [1], [0, 0, 1, 1], [], []>} : vector<40x4xbf16>, vector<4x128xbf16>, vector<40x128xf32> -> vector<40x128xf32>
    %51 = arith.addf %45, %50 : vector<40x128xf32>
    %c0_50 = arith.constant 0 : index
    %c2_51 = arith.constant 2 : index
    %c0_52 = arith.constant 0 : index
    %52 = vector.load %arg3[%c0_50, %c2_51, %c0_52] : memref<1x48x4xbf16, #tpu.memory_space<vmem>>, vector<1x40x4xbf16>
    %53 = vector.shape_cast %52 : vector<1x40x4xbf16> to vector<40x4xbf16>
    %c8 = arith.constant 8 : index
    %c0_53 = arith.constant 0 : index
    %c0_54 = arith.constant 0 : index
    %54 = vector.load %arg4[%c8, %c0_53, %c0_54] : memref<9x4x128xbf16, #tpu.memory_space<vmem>>, vector<1x4x128xbf16>
    %55 = vector.shape_cast %54 : vector<1x4x128xbf16> to vector<4x128xbf16>
    %cst_55 = arith.constant dense<0.000000e+00> : vector<40x128xf32>
    %56 = tpu.matmul %53, %55, %cst_55 {dimension_numbers = #tpu.dot_dimension_numbers<[1], [0], [0], [1], [0, 0, 1, 1], [], []>} : vector<40x4xbf16>, vector<4x128xbf16>, vector<40x128xf32> -> vector<40x128xf32>
    %57 = arith.addf %51, %56 : vector<40x128xf32>
    %c0_56 = arith.constant 0 : index
    %c0_57 = arith.constant 0 : index
    %c0_58 = arith.constant 0 : index
    %58 = vector.load %arg6[%c0_56, %c0_57, %c0_58] : memref<1x40x128xf32, #tpu.memory_space<vmem>>, vector<1x40x128xf32>
    %59 = vector.shape_cast %58 : vector<1x40x128xf32> to vector<40x128xf32>
    %60 = vector.shape_cast %57 : vector<40x128xf32> to vector<1x40x128xf32>
    tpu.vector_store %arg6[%c0_56, %c0_57, %c0_58], %60 {strides = array<i32>} : memref<1x40x128xf32, #tpu.memory_space<vmem>>, vector<1x40x128xf32>,
    return
  }
  func.func @transform_0(%arg0: i32) -> (i32, i32, i32) {
    %c0_i32 = arith.constant 0 : i32
    %0 = arith.addi %arg0, %c0_i32 : i32
    %c0_i32_0 = arith.constant 0 : i32
    %c0_i32_1 = arith.constant 0 : i32
    %c0_i32_2 = arith.constant 0 : i32
    return %0, %c0_i32_0, %c0_i32_1 : i32, i32, i32
  }
  func.func @transform_1(%arg0: i32) -> (i32, i32, i32) {
    %c1_i32 = arith.constant 1 : i32
    %0 = arith.addi %arg0, %c1_i32 : i32
    %c0_i32 = arith.constant 0 : i32
    %c0_i32_0 = arith.constant 0 : i32
    %c0_i32_1 = arith.constant 0 : i32
    return %0, %c0_i32, %c0_i32_0 : i32, i32, i32
  }
  func.func @transform_2(%arg0: i32) -> (i32, i32, i32) {
    %c2_i32 = arith.constant 2 : i32
    %0 = arith.addi %arg0, %c2_i32 : i32
    %c0_i32 = arith.constant 0 : i32
    %c0_i32_0 = arith.constant 0 : i32
    %c0_i32_1 = arith.constant 0 : i32
    return %0, %c0_i32, %c0_i32_0 : i32, i32, i32
  }
  func.func @transform_3(%arg0: i32) -> (i32, i32, i32) {
    %c0_i32 = arith.constant 0 : i32
    %c0_i32_0 = arith.constant 0 : i32
    %c0_i32_1 = arith.constant 0 : i32
    %c0_i32_2 = arith.constant 0 : i32
    return %c0_i32, %c0_i32_0, %c0_i32_1 : i32, i32, i32
  }
  func.func @transform_4(%arg0: i32) -> (i32, i32) {
    %c0_i32 = arith.constant 0 : i32
    %c0_i32_0 = arith.constant 0 : i32
    %c0_i32_1 = arith.constant 0 : i32
    return %c0_i32, %c0_i32_0 : i32, i32
  }
  func.func @transform_5(%arg0: i32) -> (i32, i32, i32) {
    %c0_i32 = arith.constant 0 : i32
    %c0_i32_0 = arith.constant 0 : i32
    %c0_i32_1 = arith.constant 0 : i32
    return %arg0, %c0_i32, %c0_i32_0 : i32, i32, i32
  }
}

</mosaic_0001>

<llo_original>
// kernel: _conv_ann_forward.1
$region0: #{_conv_ann_forward.1}
  #allocation0 [shape = 'u32[]', space=smem, size = 0x4, offset = 0x4, fixed_abs, tag = 'smem constant byte address 0x4 - core index']
  #allocation1 [shape = 'u32[144,128]{1,0:T(1,128)}', space=vmem, size = 0x12000, scoped, tag = 'internal scratch']
  %s0 = inlined_call_operand.vmem [shape: bf16[18,48,4], index: 0, kind: input, shape index: {}, may-alias: {0,1,2}]
  %s1 = inlined_call_operand.vmem [shape: bf16[18,48,4], index: 1, kind: input, shape index: {}, may-alias: {0,1,2}]
  %s2 = inlined_call_operand.vmem [shape: bf16[18,48,4], index: 2, kind: input, shape index: {}, may-alias: {0,1,2}]
  %s3 = inlined_call_operand.vmem [shape: bf16[9,4,128], index: 3, kind: input, shape index: {}]
  %s4 = inlined_call_operand.vmem [shape: f32[1,128], index: 4, kind: input, shape index: {}]
  %s5 = inlined_call_operand.vmem [shape: f32[16,40,128], index: 5, kind: output, shape index: {}]
  %s6 = sld [smem:[#allocation0]]
  $region53: #{_conv_ann_forward.1} parent=0
    _
  %s8 = ssub.s32 1, %s6
  %s9 = scalar_select 0, %s8, %s6
  loop: start=0, step=1, limit=18
  $region2: #{_conv_ann_forward.1} parent=0 // loop_pre_header
    _
  $region3: #{_conv_ann_forward.1} parent=0 // loop_header
    %s11 = sphi 0, %s15
    %p12 = scmp.ge.s32.totalorder %s11, 18
    %s21 = sphi 0, %s23
    %s24 = sphi 0, %s21
    %s25 = sphi 0, %s24
    %s41 = sphi 0, %s25
    %s49 = sphi 0, %s51
    %s52 = sphi 0, %s49
    %s53 = sphi 0, %s52
    %s69 = sphi 0, %s53
    %s77 = sphi 0, %s79
    %s80 = sphi 0, %s77
    %s81 = sphi 0, %s80
    %s97 = sphi 0, %s81
    %s101 = sphi 0, %s101
    %s103 = sphi 0, %s101
    %s104 = sphi 0, %s103
    %s118 = sphi 0, %s104
    %s122 = sphi 0, %s122
    %s124 = sphi 0, %s122
    %s125 = sphi 0, %s124
    %s139 = sphi 0, %s125
    %s145 = sphi 0, %s147
    %s148 = sphi 0, %s145
    %s149 = sphi 0, %s148
    %s165 = sphi 0, %s149
  $region4: #{_conv_ann_forward.1} parent=0 // loop_header_branch
    %14 = sbr.rel (%p12) target = $region8
  $region5: #{_conv_ann_forward.1} parent=0 // loop_body
    %s16 = ssub.s32 %s11, 1
    %s17 = ssub.s32 %s11, 2
    %s18 = sadd.s32 %s11, 1
    %s19 = ssub.s32 %s11, %s18
    %p20 = scmp.eq.s32.totalorder %s19, 0
    %s22 = sadd.s32 %s21, 1
    %s23 = scalar_select %p20, %s21, %s22
    %p26 = pneg %p20
    %p27 = scmp.eq.s32.totalorder %s11, 15
    %p28 = por %p26, %p27
    %p29 = scmp.ne.s32.totalorder %s21, %s24
    %p30 = scmp.eq.s32.totalorder %s11, 0
    %p31 = por %p29, %p30
    %p32 = scmp.ne.s32.totalorder %s21, %s24
    %p33 = scmp.eq.s32.totalorder %s16, 15
    %p34 = por %p32, %p33
    %p35 = scmp.ne.s32.totalorder %s24, %s25
    %p36 = scmp.eq.s32.totalorder %s16, 0
    %p37 = por %p35, %p36
    %p38 = scmp.ne.s32.totalorder %s24, %s25
    %p39 = scmp.eq.s32.totalorder %s17, 15
    %p40 = por %p38, %p39
    %p42 = scmp.ne.s32.totalorder %s25, %s41
    %p43 = scmp.eq.s32.totalorder %s17, 0
    %p44 = por %p42, %p43
    %s45 = sadd.s32 %s11, 1
    %s46 = sadd.s32 %s18, 1
    %s47 = ssub.s32 %s45, %s46
    %p48 = scmp.eq.s32.totalorder %s47, 0
    %s50 = sadd.s32 %s49, 1
    %s51 = scalar_select %p48, %s49, %s50
    %p54 = pneg %p48
    %p55 = scmp.eq.s32.totalorder %s11, 15
    %p56 = por %p54, %p55
    %p57 = scmp.ne.s32.totalorder %s49, %s52
    %p58 = scmp.eq.s32.totalorder %s11, 0
    %p59 = por %p57, %p58
    %p60 = scmp.ne.s32.totalorder %s49, %s52
    %p61 = scmp.eq.s32.totalorder %s16, 15
    %p62 = por %p60, %p61
    %p63 = scmp.ne.s32.totalorder %s52, %s53
    %p64 = scmp.eq.s32.totalorder %s16, 0
    %p65 = por %p63, %p64
    %p66 = scmp.ne.s32.totalorder %s52, %s53
    %p67 = scmp.eq.s32.totalorder %s17, 15
    %p68 = por %p66, %p67
    %p70 = scmp.ne.s32.totalorder %s53, %s69
    %p71 = scmp.eq.s32.totalorder %s17, 0
    %p72 = por %p70, %p71
    %s73 = sadd.s32 %s11, 2
    %s74 = sadd.s32 %s18, 2
    %s75 = ssub.s32 %s73, %s74
    %p76 = scmp.eq.s32.totalorder %s75, 0
    %s78 = sadd.s32 %s77, 1
    %s79 = scalar_select %p76, %s77, %s78
    %p82 = pneg %p76
    %p83 = scmp.eq.s32.totalorder %s11, 15
    %p84 = por %p82, %p83
    %p85 = scmp.ne.s32.totalorder %s77, %s80
    %p86 = scmp.eq.s32.totalorder %s11, 0
    %p87 = por %p85, %p86
    %p88 = scmp.ne.s32.totalorder %s77, %s80
    %p89 = scmp.eq.s32.totalorder %s16, 15
    %p90 = por %p88, %p89
    %p91 = scmp.ne.s32.totalorder %s80, %s81
    %p92 = scmp.eq.s32.totalorder %s16, 0
    %p93 = por %p91, %p92
    %p94 = scmp.ne.s32.totalorder %s80, %s81
    %p95 = scmp.eq.s32.totalorder %s17, 15
    %p96 = por %p94, %p95
    %p98 = scmp.ne.s32.totalorder %s81, %s97
    %p99 = scmp.eq.s32.totalorder %s17, 0
    %p100 = por %p98, %p99
    %s102 = sadd.s32 %s101, 1
    %p105 = scmp.eq.s32.totalorder %s11, 15
    %p106 = scmp.ne.s32.totalorder %s101, %s103
    %p107 = scmp.eq.s32.totalorder %s11, 0
    %p108 = por %p106, %p107
    %p109 = scmp.ne.s32.totalorder %s101, %s103
    %p110 = scmp.eq.s32.totalorder %s16, 15
    %p111 = por %p109, %p110
    %p112 = scmp.ne.s32.totalorder %s103, %s104
    %p113 = scmp.eq.s32.totalorder %s16, 0
    %p114 = por %p112, %p113
    %p115 = scmp.ne.s32.totalorder %s103, %s104
    %p116 = scmp.eq.s32.totalorder %s17, 15
    %p117 = por %p115, %p116
    %p119 = scmp.ne.s32.totalorder %s104, %s118
    %p120 = scmp.eq.s32.totalorder %s17, 0
    %p121 = por %p119, %p120
    %s123 = sadd.s32 %s122, 1
    %p126 = scmp.eq.s32.totalorder %s11, 15
    %p127 = scmp.ne.s32.totalorder %s122, %s124
    %p128 = scmp.eq.s32.totalorder %s11, 0
    %p129 = por %p127, %p128
    %p130 = scmp.ne.s32.totalorder %s122, %s124
    %p131 = scmp.eq.s32.totalorder %s16, 15
    %p132 = por %p130, %p131
    %p133 = scmp.ne.s32.totalorder %s124, %s125
    %p134 = scmp.eq.s32.totalorder %s16, 0
    %p135 = por %p133, %p134
    %p136 = scmp.ne.s32.totalorder %s124, %s125
    %p137 = scmp.eq.s32.totalorder %s17, 15
    %p138 = por %p136, %p137
    %p140 = scmp.ne.s32.totalorder %s125, %s139
    %p141 = scmp.eq.s32.totalorder %s17, 0
    %p142 = por %p140, %p141
    %s143 = ssub.s32 %s11, %s18
    %p144 = scmp.eq.s32.totalorder %s143, 0
    %s146 = sadd.s32 %s145, 1
    %s147 = scalar_select %p144, %s145, %s146
    %p150 = pneg %p144
    %p151 = scmp.eq.s32.totalorder %s11, 15
    %p152 = por %p150, %p151
    %p153 = scmp.ne.s32.totalorder %s145, %s148
    %p154 = scmp.eq.s32.totalorder %s11, 0
    %p155 = por %p153, %p154
    %p156 = scmp.ne.s32.totalorder %s145, %s148
    %p157 = scmp.eq.s32.totalorder %s16, 15
    %p158 = por %p156, %p157
    %p159 = scmp.ne.s32.totalorder %s148, %s149
    %p160 = scmp.eq.s32.totalorder %s16, 0
    %p161 = por %p159, %p160
    %p162 = scmp.ne.s32.totalorder %s148, %s149
    %p163 = scmp.eq.s32.totalorder %s17, 15
    %p164 = por %p162, %p163
    %p166 = scmp.ne.s32.totalorder %s149, %s165
    %p167 = scmp.eq.s32.totalorder %s17, 0
    %p168 = por %p166, %p167
    %p169 = scmp.le.s32.totalorder 1, %s11
    %p170 = scmp.lt.s32.totalorder %s11, 17
    %p171 = pnand %p169, %p170
    %p172 = pneg %p171
    // Predicated region
    $region9: #{_conv_ann_forward.1} parent=5 // pred_check
      _
    $region10: #{_conv_ann_forward.1} parent=5 // pred_check_branch
      %174 = sbr.rel (%p171) target = $region12
    $region11: #{_conv_ann_forward.1} parent=5 // pred_region
      %s175 = ssub.s32 %s11, 1
      // Predicated region
      $region13: #{_conv_ann_forward.1} parent=11 // pred_check
        %p176 = pneg %p114
      $region14: #{_conv_ann_forward.1} parent=11 // pred_check_branch
        %178 = sbr.rel (%p176) target = $region16
      $region15: #{_conv_ann_forward.1} parent=11 // pred_region
        _
      $region16: #{_conv_ann_forward.1} parent=11 // pred_fallthru
        _
      // Predicated region
      $region17: #{_conv_ann_forward.1} parent=11 // pred_check
        %p179 = pneg %p135
      $region18: #{_conv_ann_forward.1} parent=11 // pred_check_branch
        %181 = sbr.rel (%p179) target = $region20
      $region19: #{_conv_ann_forward.1} parent=11 // pred_region
        _
      $region20: #{_conv_ann_forward.1} parent=11 // pred_fallthru
        _
    $region12: #{_conv_ann_forward.1} parent=5 // pred_fallthru
      _
    %p182 = scmp.lt.s32.totalorder %s11, 16
    // Predicated region
    $region21: #{_conv_ann_forward.1} parent=5 // pred_check
      %p183 = pneg %p182
    $region22: #{_conv_ann_forward.1} parent=5 // pred_check_branch
      %185 = sbr.rel (%p183) target = $region24
    $region23: #{_conv_ann_forward.1} parent=5 // pred_region
      // Predicated region
      $region25: #{_conv_ann_forward.1} parent=23 // pred_check
        %p186 = pneg %p31
      $region26: #{_conv_ann_forward.1} parent=23 // pred_check_branch
        %188 = sbr.rel (%p186) target = $region28
      $region27: #{_conv_ann_forward.1} parent=23 // pred_region
        %p189 = scmp.lt.s32.totalorder %s11, 17
        %s190 = scalar_select %p189, %s11, 17
        %s191 = smul.addr %s190, 6
        %s192 = smul.addr %s191, 4
        %s193 = scalar_lea.vmem %s0, %s192
      $region28: #{_conv_ann_forward.1} parent=23 // pred_fallthru
        _
      // Predicated region
      $region29: #{_conv_ann_forward.1} parent=23 // pred_check
        %p194 = pneg %p59
      $region30: #{_conv_ann_forward.1} parent=23 // pred_check_branch
        %196 = sbr.rel (%p194) target = $region32
      $region31: #{_conv_ann_forward.1} parent=23 // pred_region
        %s197 = sadd.s32 %s11, 1
        %p198 = scmp.lt.s32.totalorder %s197, 17
        %s199 = scalar_select %p198, %s197, 17
        %s200 = smul.addr %s199, 6
        %s201 = smul.addr %s200, 4
        %s202 = scalar_lea.vmem %s1, %s201
        %s203 = sadd.s32 %s11, 1
      $region32: #{_conv_ann_forward.1} parent=23 // pred_fallthru
        _
      // Predicated region
      $region33: #{_conv_ann_forward.1} parent=23 // pred_check
        %p204 = pneg %p87
      $region34: #{_conv_ann_forward.1} parent=23 // pred_check_branch
        %206 = sbr.rel (%p204) target = $region36
      $region35: #{_conv_ann_forward.1} parent=23 // pred_region
        %s207 = sadd.s32 %s11, 2
        %p208 = scmp.lt.s32.totalorder %s207, 17
        %s209 = scalar_select %p208, %s207, 17
        %s210 = smul.addr %s209, 6
        %s211 = smul.addr %s210, 4
        %s212 = scalar_lea.vmem %s2, %s211
        %s213 = sadd.s32 %s11, 2
      $region36: #{_conv_ann_forward.1} parent=23 // pred_fallthru
        _
    $region24: #{_conv_ann_forward.1} parent=5 // pred_fallthru
      _
    %p214 = scmp.le.s32.totalorder 1, %s11
    %p215 = scmp.lt.s32.totalorder %s11, 17
    %p216 = pnand %p214, %p215
    %p217 = pneg %p216
    // Predicated region
    $region37: #{_conv_ann_forward.1} parent=5 // pred_check
      _
    $region38: #{_conv_ann_forward.1} parent=5 // pred_check_branch
      %219 = sbr.rel (%p216) target = $region40
    $region39: #{_conv_ann_forward.1} parent=5 // pred_region
      %s220 = ssub.s32 %s11, 1
      %p221 = scmp.lt.s32.totalorder %s16, 17
      %s222 = scalar_select %p221, %s16, 17
      %s223 = smul.addr %s222, 6
      %s224 = smul.addr %s223, 4
      %s225 = scalar_lea.vmem %s0, %s224
      %p226 = pneg %p37
      %p227 = pneg %p34
      %s228 = sadd.s32 %s16, 1
      %p229 = scmp.lt.s32.totalorder %s228, 17
      %s230 = scalar_select %p229, %s228, 17
      %s231 = smul.addr %s230, 6
      %s232 = smul.addr %s231, 4
      %s233 = scalar_lea.vmem %s1, %s232
      %p234 = pneg %p65
      %p235 = pneg %p62
      %s236 = sadd.s32 %s16, 2
      %p237 = scmp.lt.s32.totalorder %s236, 17
      %s238 = scalar_select %p237, %s236, 17
      %s239 = smul.addr %s238, 6
      %s240 = smul.addr %s239, 4
      %s241 = scalar_lea.vmem %s2, %s240
      %p242 = pneg %p93
      %p243 = pneg %p90
      %p244 = pneg %p114
      %p245 = pneg %p111
      %p246 = pneg %p135
      %p247 = pneg %p132
      %p248 = pneg %p161
      %p249 = pneg %p158
      %p250 = scmp.lt.s32.totalorder %s16, 15
      %s251 = scalar_select %p250, %s16, 15
      %s252 = smul.addr %s251, 5
      %s253 = smul.addr %s252, 8
      %s254 = scalar_lea.vmem %s5, %s253
      %p255 = scmp.lt.s32.totalorder %s16, 17
      %s256 = scalar_select %p255, %s16, 17
      %s257 = smul.addr %s256, 6
      %s258 = smul.addr %s257, 4
      %s259 = scalar_lea.vmem %s0, %s258
      %s260 = sadd.s32 %s16, 1
      %p261 = scmp.lt.s32.totalorder %s260, 17
      %s262 = scalar_select %p261, %s260, 17
      %s263 = smul.addr %s262, 6
      %s264 = smul.addr %s263, 4
      %s265 = scalar_lea.vmem %s1, %s264
      %s266 = sadd.s32 %s16, 1
      %s267 = sadd.s32 %s16, 2
      %p268 = scmp.lt.s32.totalorder %s267, 17
      %s269 = scalar_select %p268, %s267, 17
      %s270 = smul.addr %s269, 6
      %s271 = smul.addr %s270, 4
      %s272 = scalar_lea.vmem %s2, %s271
      %s273 = sadd.s32 %s16, 2
      %p274 = scmp.lt.s32.totalorder %s16, 15
      %s275 = scalar_select %p274, %s16, 15
      %s276 = smul.addr %s275, 5
      %s277 = smul.addr %s276, 8
      %s278 = scalar_lea.vmem %s5, %s277
      %v280 = vld [vmem:[%s4] sm:$0x1]
      %v282 = vlaneseq
      %v283 = vshrl.u32 %v282, 7
      %v284 = vsub.s32 0, %v283
      %v285 = vrot.slane %v280, %v284
      %v287 = vadd.f32 %v285, 0.0
      %v288 = vld [vmem:[%s259] sm:$0xf]
      %v289 = vld [vmem:[%s259 + $0x4] sm:$0xf]
      %v290 = vld [vmem:[%s259 + $0x8] sm:$0xf]
      %v291 = vld [vmem:[%s259 + $0xc] sm:$0xf]
      %v292 = vld [vmem:[%s259 + $0x10] sm:$0xf]
      %v293 = vld [vmem:[%s3] sm:$0x3]
      %v299 = vunpack.c.l.b16 %v288
      %v300 = vunpack.c.l.b16 %v289
      %v301 = vunpack.c.l.b16 %v290
      %v302 = vunpack.c.l.b16 %v291
      %v303 = vunpack.c.l.b16 %v292
      %v304 = vpack.c.b16 %v300, %v299
      %v305 = vpack.c.b16 %v302, %v301
      %v306 = vpack.c.b16 %v303, %v303
      %vm307 = vcmask 31744
      %v309 = vsel %vm307, %v304, 0
      %v312 = vsel %vm307, %v305, 0
      %v315 = vsel %vm307, %v306, 0
      %vm317 = vcmask 1041408
      %v319 = vsel %vm317, %v293, 0
      %321 = vmatprep.subr.bf16.mxu0 0
      %322 = vmatpush1.bf16.msra.mxu0 0
      %323 = vmatprep.subr.bf16.mxu0 0
      %324 = vmatpush1.bf16.msra.mxu0 0
      %325 = vmatprep.subr.bf16.mxu0 0
      %326 = vmatpush1.bf16.msra.mxu0 0
      %327 = vmatprep.subr.bf16.mxu0 0
      %328 = vmatpush1.bf16.msra.mxu0 0
      %329 = vmatprep.subr.bf16.mxu0 0
      %330 = vmatpush1.bf16.msra.mxu0 0
      %331 = vmatprep.subr.bf16.mxu0 0
      %332 = vmatpush1.bf16.msra.mxu0 0
      %333 = vmatprep.subr.bf16.mxu0 0
      %334 = vmatpush1.bf16.msra.mxu0 0
      %335 = vmatprep.subr.bf16.mxu0 0
      %336 = vmatpush1.bf16.msra.mxu0 %v319
      %337 = vmatprep.subr.bf16.mxu0 0
      %338 = vmatpush2.bf16.msra.mxu0 0
      %339 = vmatprep.subr.bf16.mxu0 0
      %340 = vmatpush2.bf16.msra.mxu0 0
      %341 = vmatprep.subr.bf16.mxu0 0
      %342 = vmatpush2.bf16.msra.mxu0 0
      %343 = vmatprep.subr.bf16.mxu0 0
      %344 = vmatpush2.bf16.msra.mxu0 0
      %345 = vmatprep.subr.bf16.mxu0 0
      %346 = vmatpush2.bf16.msra.mxu0 0
      %347 = vmatprep.subr.bf16.mxu0 0
      %348 = vmatpush2.bf16.msra.mxu0 0
      %349 = vmatprep.subr.bf16.mxu0 0
      %350 = vmatpush2.bf16.msra.mxu0 0
      %351 = vmatprep.subr.bf16.mxu0 0
      %352 = vmatpush2.bf16.msra.mxu0 0
      %353 = vmatprep.mubr.bf16.mxu0 0
      %354 = vmatmul.mubr.bf16.gmra.mxu0 %v309
      %v355 = vpop.f32.mrf.mxu0
      %v356 = vadd.f32 0.0, %v355
      %v357 = vpop.f32.mrf.mxu0
      %v358 = vpop.f32.mrf.mxu0
      %v359 = vadd.f32 0.0, %v358
      %v360 = vpop.f32.mrf.mxu0
      %361 = vmatprep.mubr.bf16.mxu0 0
      %362 = vmatmul.mubr.bf16.gmra.mxu0 %v312
      %v363 = vpop.f32.mrf.mxu0
      %v364 = vadd.f32 0.0, %v363
      %v365 = vpop.f32.mrf.mxu0
      %v366 = vpop.f32.mrf.mxu0
      %v367 = vadd.f32 0.0, %v366
      %v368 = vpop.f32.mrf.mxu0
      %369 = vmatprep.mubr.bf16.mxu0 0
      %370 = vmatmul.mubr.bf16.gmra.mxu0 %v315
      %v371 = vpop.f32.mrf.mxu0
      %v372 = vadd.f32 0.0, %v371
      %v373 = vpop.f32.mrf.mxu0
      %v374 = vpop.f32.mrf.mxu0
      %v375 = vpop.f32.mrf.mxu0
      %376 = vdwg.mxu0
      %v377 = vadd.f32 %v287, %v356
      %v378 = vadd.f32 %v287, %v359
      %v379 = vadd.f32 %v287, %v364
      %v380 = vadd.f32 %v287, %v367
      %v381 = vadd.f32 %v287, %v372
      %v382 = vld [vmem:[%s259] sm:$0xf]
      %v383 = vld [vmem:[%s259 + $0x4] sm:$0xf]
      %v384 = vld [vmem:[%s259 + $0x8] sm:$0xf]
      %v385 = vld [vmem:[%s259 + $0xc] sm:$0xf]
      %v386 = vld [vmem:[%s259 + $0x10] sm:$0xf]
      %v387 = vld [vmem:[%s259 + $0x14] sm:$0x1]
      %s388 = scalar_lea.vmem %s3, 2
      %v389 = vld [vmem:[%s388] sm:$0x3]
      %v396 = vunpack.c.l.b16 %v382
      %v397 = vunpack.c.l.b16 %v383
      %v398 = vunpack.c.l.b16 %v384
      %v399 = vunpack.c.l.b16 %v385
      %v400 = vunpack.c.l.b16 %v386
      %v401 = vunpack.c.l.b16 %v387
      %v402 = vpack.c.b16 %v397, %v396
      %v403 = vpack.c.b16 %v399, %v398
      %v404 = vpack.c.b16 %v401, %v400
      %vm405 = vsmask.f32 7424
      %v407 = vshrl.u32 %v402, 16
      %v409 = vshll.u32 %v402, 16
      %v411 = vrot.slane %v409, 1
      %v412 = vor.u32 %v407, %v411
      %v414 = vshll.u32 %v403, 16
      %v416 = vrot.slane %v414, 1
      %v417 = vsel %vm405, %v412, %v416
      %v418 = vshrl.u32 %v403, 16
      %v420 = vor.u32 %v418, %v416
      %v422 = vshll.u32 %v404, 16
      %v424 = vrot.slane %v422, 1
      %v425 = vsel %vm405, %v420, %v424
      %v426 = vshrl.u32 %v404, 16
      %v428 = vor.u32 %v426, %v424
      %v430 = vsel %vm307, %v417, 0
      %v433 = vsel %vm307, %v425, 0
      %v436 = vsel %vm307, %v428, 0
      %v439 = vsel %vm317, %v389, 0
      %441 = vmatprep.subr.bf16.mxu0 0
      %442 = vmatpush1.bf16.msra.mxu0 0
      %443 = vmatprep.subr.bf16.mxu0 0
      %444 = vmatpush1.bf16.msra.mxu0 0
      %445 = vmatprep.subr.bf16.mxu0 0
      %446 = vmatpush1.bf16.msra.mxu0 0
      %447 = vmatprep.subr.bf16.mxu0 0
      %448 = vmatpush1.bf16.msra.mxu0 0
      %449 = vmatprep.subr.bf16.mxu0 0
      %450 = vmatpush1.bf16.msra.mxu0 0
      %451 = vmatprep.subr.bf16.mxu0 0
      %452 = vmatpush1.bf16.msra.mxu0 0
      %453 = vmatprep.subr.bf16.mxu0 0
      %454 = vmatpush1.bf16.msra.mxu0 0
      %455 = vmatprep.subr.bf16.mxu0 0
      %456 = vmatpush1.bf16.msra.mxu0 %v439
      %457 = vmatprep.subr.bf16.mxu0 0
      %458 = vmatpush2.bf16.msra.mxu0 0
      %459 = vmatprep.subr.bf16.mxu0 0
      %460 = vmatpush2.bf16.msra.mxu0 0
      %461 = vmatprep.subr.bf16.mxu0 0
      %462 = vmatpush2.bf16.msra.mxu0 0
      %463 = vmatprep.subr.bf16.mxu0 0
      %464 = vmatpush2.bf16.msra.mxu0 0
      %465 = vmatprep.subr.bf16.mxu0 0
      %466 = vmatpush2.bf16.msra.mxu0 0
      %467 = vmatprep.subr.bf16.mxu0 0
      %468 = vmatpush2.bf16.msra.mxu0 0
      %469 = vmatprep.subr.bf16.mxu0 0
      %470 = vmatpush2.bf16.msra.mxu0 0
      %471 = vmatprep.subr.bf16.mxu0 0
      %472 = vmatpush2.bf16.msra.mxu0 0
      %473 = vmatprep.mubr.bf16.mxu0 0
      %474 = vmatmul.mubr.bf16.gmra.mxu0 %v430
      %v475 = vpop.f32.mrf.mxu0
      %v476 = vadd.f32 0.0, %v475
      %v477 = vpop.f32.mrf.mxu0
      %v478 = vpop.f32.mrf.mxu0
      %v479 = vadd.f32 0.0, %v478
      %v480 = vpop.f32.mrf.mxu0
      %481 = vmatprep.mubr.bf16.mxu0 0
      %482 = vmatmul.mubr.bf16.gmra.mxu0 %v433
      %v483 = vpop.f32.mrf.mxu0
      %v484 = vadd.f32 0.0, %v483
      %v485 = vpop.f32.mrf.mxu0
      %v486 = vpop.f32.mrf.mxu0
      %v487 = vadd.f32 0.0, %v486
      %v488 = vpop.f32.mrf.mxu0
      %489 = vmatprep.mubr.bf16.mxu0 0
      %490 = vmatmul.mubr.bf16.gmra.mxu0 %v436
      %v491 = vpop.f32.mrf.mxu0
      %v492 = vadd.f32 0.0, %v491
      %v493 = vpop.f32.mrf.mxu0
      %v494 = vpop.f32.mrf.mxu0
      %v495 = vpop.f32.mrf.mxu0
      %496 = vdwg.mxu0
      %v497 = vadd.f32 %v377, %v476
      %v498 = vadd.f32 %v378, %v479
      %v499 = vadd.f32 %v379, %v484
      %v500 = vadd.f32 %v380, %v487
      %v501 = vadd.f32 %v381, %v492
      %v502 = vld [vmem:[%s259] sm:$0xe]
      %s503 = scalar_lea.vmem %s3, 4
      %v504 = vld [vmem:[%s503] sm:$0x3]
      %v506 = vunpack.c.l.b16 %v502
      %v507 = vpack.c.b16 %v397, %v506
      %vm508 = vcmask 1046528
      %v509 = vrot.slane %v507, 1
      %v510 = vrot.slane %v403, 1
      %v511 = vsel %vm508, %v509, %v510
      %v512 = vrot.slane %v404, 1
      %v513 = vsel %vm508, %v510, %v512
      %v515 = vsel %vm307, %v511, 0
      %v518 = vsel %vm307, %v513, 0
      %v521 = vsel %vm307, %v512, 0
      %v524 = vsel %vm317, %v504, 0
      %526 = vmatprep.subr.bf16.mxu0 0
      %527 = vmatpush1.bf16.msra.mxu0 0
      %528 = vmatprep.subr.bf16.mxu0 0
      %529 = vmatpush1.bf16.msra.mxu0 0
      %530 = vmatprep.subr.bf16.mxu0 0
      %531 = vmatpush1.bf16.msra.mxu0 0
      %532 = vmatprep.subr.bf16.mxu0 0
      %533 = vmatpush1.bf16.msra.mxu0 0
      %534 = vmatprep.subr.bf16.mxu0 0
      %535 = vmatpush1.bf16.msra.mxu0 0
      %536 = vmatprep.subr.bf16.mxu0 0
      %537 = vmatpush1.bf16.msra.mxu0 0
      %538 = vmatprep.subr.bf16.mxu0 0
      %539 = vmatpush1.bf16.msra.mxu0 0
      %540 = vmatprep.subr.bf16.mxu0 0
      %541 = vmatpush1.bf16.msra.mxu0 %v524
      %542 = vmatprep.subr.bf16.mxu0 0
      %543 = vmatpush2.bf16.msra.mxu0 0
      %544 = vmatprep.subr.bf16.mxu0 0
      %545 = vmatpush2.bf16.msra.mxu0 0
      %546 = vmatprep.subr.bf16.mxu0 0
      %547 = vmatpush2.bf16.msra.mxu0 0
      %548 = vmatprep.subr.bf16.mxu0 0
      %549 = vmatpush2.bf16.msra.mxu0 0
      %550 = vmatprep.subr.bf16.mxu0 0
      %551 = vmatpush2.bf16.msra.mxu0 0
      %552 = vmatprep.subr.bf16.mxu0 0
      %553 = vmatpush2.bf16.msra.mxu0 0
      %554 = vmatprep.subr.bf16.mxu0 0
      %555 = vmatpush2.bf16.msra.mxu0 0
      %556 = vmatprep.subr.bf16.mxu0 0
      %557 = vmatpush2.bf16.msra.mxu0 0
      %558 = vmatprep.mubr.bf16.mxu0 0
      %559 = vmatmul.mubr.bf16.gmra.mxu0 %v515
      %v560 = vpop.f32.mrf.mxu0
      %v561 = vadd.f32 0.0, %v560
      %v562 = vpop.f32.mrf.mxu0
      %v563 = vpop.f32.mrf.mxu0
      %v564 = vadd.f32 0.0, %v563
      %v565 = vpop.f32.mrf.mxu0
      %566 = vmatprep.mubr.bf16.mxu0 0
      %567 = vmatmul.mubr.bf16.gmra.mxu0 %v518
      %v568 = vpop.f32.mrf.mxu0
      %v569 = vadd.f32 0.0, %v568
      %v570 = vpop.f32.mrf.mxu0
      %v571 = vpop.f32.mrf.mxu0
      %v572 = vadd.f32 0.0, %v571
      %v573 = vpop.f32.mrf.mxu0
      %574 = vmatprep.mubr.bf16.mxu0 0
      %575 = vmatmul.mubr.bf16.gmra.mxu0 %v521
      %v576 = vpop.f32.mrf.mxu0
      %v577 = vadd.f32 0.0, %v576
      %v578 = vpop.f32.mrf.mxu0
      %v579 = vpop.f32.mrf.mxu0
      %v580 = vpop.f32.mrf.mxu0
      %581 = vdwg.mxu0
      %v582 = vadd.f32 %v497, %v561
      %v583 = vadd.f32 %v498, %v564
      %v584 = vadd.f32 %v499, %v569
      %v585 = vadd.f32 %v500, %v572
      %v586 = vadd.f32 %v501, %v577
      %v587 = vld [vmem:[%s265] sm:$0xf]
      %v588 = vld [vmem:[%s265 + $0x4] sm:$0xf]
      %v589 = vld [vmem:[%s265 + $0x8] sm:$0xf]
      %v590 = vld [vmem:[%s265 + $0xc] sm:$0xf]
      %v591 = vld [vmem:[%s265 + $0x10] sm:$0xf]
      %s592 = scalar_lea.vmem %s3, 6
      %v593 = vld [vmem:[%s592] sm:$0x3]
      %v599 = vunpack.c.l.b16 %v587
      %v600 = vunpack.c.l.b16 %v588
      %v601 = vunpack.c.l.b16 %v589
      %v602 = vunpack.c.l.b16 %v590
      %v603 = vunpack.c.l.b16 %v591
      %v604 = vpack.c.b16 %v600, %v599
      %v605 = vpack.c.b16 %v602, %v601
      %v606 = vpack.c.b16 %v603, %v603
      %v608 = vsel %vm307, %v604, 0
      %v611 = vsel %vm307, %v605, 0
      %v614 = vsel %vm307, %v606, 0
      %v617 = vsel %vm317, %v593, 0
      %619 = vmatprep.subr.bf16.mxu0 0
      %620 = vmatpush1.bf16.msra.mxu0 0
      %621 = vmatprep.subr.bf16.mxu0 0
      %622 = vmatpush1.bf16.msra.mxu0 0
      %623 = vmatprep.subr.bf16.mxu0 0
      %624 = vmatpush1.bf16.msra.mxu0 0
      %625 = vmatprep.subr.bf16.mxu0 0
      %626 = vmatpush1.bf16.msra.mxu0 0
      %627 = vmatprep.subr.bf16.mxu0 0
      %628 = vmatpush1.bf16.msra.mxu0 0
      %629 = vmatprep.subr.bf16.mxu0 0
      %630 = vmatpush1.bf16.msra.mxu0 0
      %631 = vmatprep.subr.bf16.mxu0 0
      %632 = vmatpush1.bf16.msra.mxu0 0
      %633 = vmatprep.subr.bf16.mxu0 0
      %634 = vmatpush1.bf16.msra.mxu0 %v617
      %635 = vmatprep.subr.bf16.mxu0 0
      %636 = vmatpush2.bf16.msra.mxu0 0
      %637 = vmatprep.subr.bf16.mxu0 0
      %638 = vmatpush2.bf16.msra.mxu0 0
      %639 = vmatprep.subr.bf16.mxu0 0
      %640 = vmatpush2.bf16.msra.mxu0 0
      %641 = vmatprep.subr.bf16.mxu0 0
      %642 = vmatpush2.bf16.msra.mxu0 0
      %643 = vmatprep.subr.bf16.mxu0 0
      %644 = vmatpush2.bf16.msra.mxu0 0
      %645 = vmatprep.subr.bf16.mxu0 0
      %646 = vmatpush2.bf16.msra.mxu0 0
      %647 = vmatprep.subr.bf16.mxu0 0
      %648 = vmatpush2.bf16.msra.mxu0 0
      %649 = vmatprep.subr.bf16.mxu0 0
      %650 = vmatpush2.bf16.msra.mxu0 0
      %651 = vmatprep.mubr.bf16.mxu0 0
      %652 = vmatmul.mubr.bf16.gmra.mxu0 %v608
      %v653 = vpop.f32.mrf.mxu0
      %v654 = vadd.f32 0.0, %v653
      %v655 = vpop.f32.mrf.mxu0
      %v656 = vpop.f32.mrf.mxu0
      %v657 = vadd.f32 0.0, %v656
      %v658 = vpop.f32.mrf.mxu0
      %659 = vmatprep.mubr.bf16.mxu0 0
      %660 = vmatmul.mubr.bf16.gmra.mxu0 %v611
      %v661 = vpop.f32.mrf.mxu0
      %v662 = vadd.f32 0.0, %v661
      %v663 = vpop.f32.mrf.mxu0
      %v664 = vpop.f32.mrf.mxu0
      %v665 = vadd.f32 0.0, %v664
      %v666 = vpop.f32.mrf.mxu0
      %667 = vmatprep.mubr.bf16.mxu0 0
      %668 = vmatmul.mubr.bf16.gmra.mxu0 %v614
      %v669 = vpop.f32.mrf.mxu0
      %v670 = vadd.f32 0.0, %v669
      %v671 = vpop.f32.mrf.mxu0
      %v672 = vpop.f32.mrf.mxu0
      %v673 = vpop.f32.mrf.mxu0
      %674 = vdwg.mxu0
      %v675 = vadd.f32 %v582, %v654
      %v676 = vadd.f32 %v583, %v657
      %v677 = vadd.f32 %v584, %v662
      %v678 = vadd.f32 %v585, %v665
      %v679 = vadd.f32 %v586, %v670
      %v680 = vld [vmem:[%s265] sm:$0xf]
      %v681 = vld [vmem:[%s265 + $0x4] sm:$0xf]
      %v682 = vld [vmem:[%s265 + $0x8] sm:$0xf]
      %v683 = vld [vmem:[%s265 + $0xc] sm:$0xf]
      %v684 = vld [vmem:[%s265 + $0x10] sm:$0xf]
      %v685 = vld [vmem:[%s265 + $0x14] sm:$0x1]
      %s686 = scalar_lea.vmem %s3, 8
      %v687 = vld [vmem:[%s686] sm:$0x3]
      %v694 = vunpack.c.l.b16 %v680
      %v695 = vunpack.c.l.b16 %v681
      %v696 = vunpack.c.l.b16 %v682
      %v697 = vunpack.c.l.b16 %v683
      %v698 = vunpack.c.l.b16 %v684
      %v699 = vunpack.c.l.b16 %v685
      %v700 = vpack.c.b16 %v695, %v694
      %v701 = vpack.c.b16 %v697, %v696
      %v702 = vpack.c.b16 %v699, %v698
      %v704 = vshrl.u32 %v700, 16
      %v706 = vshll.u32 %v700, 16
      %v708 = vrot.slane %v706, 1
      %v709 = vor.u32 %v704, %v708
      %v711 = vshll.u32 %v701, 16
      %v713 = vrot.slane %v711, 1
      %v714 = vsel %vm405, %v709, %v713
      %v715 = vshrl.u32 %v701, 16
      %v717 = vor.u32 %v715, %v713
      %v719 = vshll.u32 %v702, 16
      %v721 = vrot.slane %v719, 1
      %v722 = vsel %vm405, %v717, %v721
      %v723 = vshrl.u32 %v702, 16
      %v725 = vor.u32 %v723, %v721
      %v727 = vsel %vm307, %v714, 0
      %v730 = vsel %vm307, %v722, 0
      %v733 = vsel %vm307, %v725, 0
      %v736 = vsel %vm317, %v687, 0
      %738 = vmatprep.subr.bf16.mxu0 0
      %739 = vmatpush1.bf16.msra.mxu0 0
      %740 = vmatprep.subr.bf16.mxu0 0
      %741 = vmatpush1.bf16.msra.mxu0 0
      %742 = vmatprep.subr.bf16.mxu0 0
      %743 = vmatpush1.bf16.msra.mxu0 0
      %744 = vmatprep.subr.bf16.mxu0 0
      %745 = vmatpush1.bf16.msra.mxu0 0
      %746 = vmatprep.subr.bf16.mxu0 0
      %747 = vmatpush1.bf16.msra.mxu0 0
      %748 = vmatprep.subr.bf16.mxu0 0
      %749 = vmatpush1.bf16.msra.mxu0 0
      %750 = vmatprep.subr.bf16.mxu0 0
      %751 = vmatpush1.bf16.msra.mxu0 0
      %752 = vmatprep.subr.bf16.mxu0 0
      %753 = vmatpush1.bf16.msra.mxu0 %v736
      %754 = vmatprep.subr.bf16.mxu0 0
      %755 = vmatpush2.bf16.msra.mxu0 0
      %756 = vmatprep.subr.bf16.mxu0 0
      %757 = vmatpush2.bf16.msra.mxu0 0
      %758 = vmatprep.subr.bf16.mxu0 0
      %759 = vmatpush2.bf16.msra.mxu0 0
      %760 = vmatprep.subr.bf16.mxu0 0
      %761 = vmatpush2.bf16.msra.mxu0 0
      %762 = vmatprep.subr.bf16.mxu0 0
      %763 = vmatpush2.bf16.msra.mxu0 0
      %764 = vmatprep.subr.bf16.mxu0 0
      %765 = vmatpush2.bf16.msra.mxu0 0
      %766 = vmatprep.subr.bf16.mxu0 0
      %767 = vmatpush2.bf16.msra.mxu0 0
      %768 = vmatprep.subr.bf16.mxu0 0
      %769 = vmatpush2.bf16.msra.mxu0 0
      %770 = vmatprep.mubr.bf16.mxu0 0
      %771 = vmatmul.mubr.bf16.gmra.mxu0 %v727
      %v772 = vpop.f32.mrf.mxu0
      %v773 = vadd.f32 0.0, %v772
      %v774 = vpop.f32.mrf.mxu0
      %v775 = vpop.f32.mrf.mxu0
      %v776 = vadd.f32 0.0, %v775
      %v777 = vpop.f32.mrf.mxu0
      %778 = vmatprep.mubr.bf16.mxu0 0
      %779 = vmatmul.mubr.bf16.gmra.mxu0 %v730
      %v780 = vpop.f32.mrf.mxu0
      %v781 = vadd.f32 0.0, %v780
      %v782 = vpop.f32.mrf.mxu0
      %v783 = vpop.f32.mrf.mxu0
      %v784 = vadd.f32 0.0, %v783
      %v785 = vpop.f32.mrf.mxu0
      %786 = vmatprep.mubr.bf16.mxu0 0
      %787 = vmatmul.mubr.bf16.gmra.mxu0 %v733
      %v788 = vpop.f32.mrf.mxu0
      %v789 = vadd.f32 0.0, %v788
      %v790 = vpop.f32.mrf.mxu0
      %v791 = vpop.f32.mrf.mxu0
      %v792 = vpop.f32.mrf.mxu0
      %793 = vdwg.mxu0
      %v794 = vadd.f32 %v675, %v773
      %v795 = vadd.f32 %v676, %v776
      %v796 = vadd.f32 %v677, %v781
      %v797 = vadd.f32 %v678, %v784
      %v798 = vadd.f32 %v679, %v789
      %v799 = vld [vmem:[%s265] sm:$0xe]
      %s800 = scalar_lea.vmem %s3, 10
      %v801 = vld [vmem:[%s800] sm:$0x3]
      %v803 = vunpack.c.l.b16 %v799
      %v804 = vpack.c.b16 %v695, %v803
      %v805 = vrot.slane %v804, 1
      %v806 = vrot.slane %v701, 1
      %v807 = vsel %vm508, %v805, %v806
      %v808 = vrot.slane %v702, 1
      %v809 = vsel %vm508, %v806, %v808
      %v811 = vsel %vm307, %v807, 0
      %v814 = vsel %vm307, %v809, 0
      %v817 = vsel %vm307, %v808, 0
      %v820 = vsel %vm317, %v801, 0
      %822 = vmatprep.subr.bf16.mxu0 0
      %823 = vmatpush1.bf16.msra.mxu0 0
      %824 = vmatprep.subr.bf16.mxu0 0
      %825 = vmatpush1.bf16.msra.mxu0 0
      %826 = vmatprep.subr.bf16.mxu0 0
      %827 = vmatpush1.bf16.msra.mxu0 0
      %828 = vmatprep.subr.bf16.mxu0 0
      %829 = vmatpush1.bf16.msra.mxu0 0
      %830 = vmatprep.subr.bf16.mxu0 0
      %831 = vmatpush1.bf16.msra.mxu0 0
      %832 = vmatprep.subr.bf16.mxu0 0
      %833 = vmatpush1.bf16.msra.mxu0 0
      %834 = vmatprep.subr.bf16.mxu0 0
      %835 = vmatpush1.bf16.msra.mxu0 0
      %836 = vmatprep.subr.bf16.mxu0 0
      %837 = vmatpush1.bf16.msra.mxu0 %v820
      %838 = vmatprep.subr.bf16.mxu0 0
      %839 = vmatpush2.bf16.msra.mxu0 0
      %840 = vmatprep.subr.bf16.mxu0 0
      %841 = vmatpush2.bf16.msra.mxu0 0
      %842 = vmatprep.subr.bf16.mxu0 0
      %843 = vmatpush2.bf16.msra.mxu0 0
      %844 = vmatprep.subr.bf16.mxu0 0
      %845 = vmatpush2.bf16.msra.mxu0 0
      %846 = vmatprep.subr.bf16.mxu0 0
      %847 = vmatpush2.bf16.msra.mxu0 0
      %848 = vmatprep.subr.bf16.mxu0 0
      %849 = vmatpush2.bf16.msra.mxu0 0
      %850 = vmatprep.subr.bf16.mxu0 0
      %851 = vmatpush2.bf16.msra.mxu0 0
      %852 = vmatprep.subr.bf16.mxu0 0
      %853 = vmatpush2.bf16.msra.mxu0 0
      %854 = vmatprep.mubr.bf16.mxu0 0
      %855 = vmatmul.mubr.bf16.gmra.mxu0 %v811
      %v856 = vpop.f32.mrf.mxu0
      %v857 = vadd.f32 0.0, %v856
      %v858 = vpop.f32.mrf.mxu0
      %v859 = vpop.f32.mrf.mxu0
      %v860 = vadd.f32 0.0, %v859
      %v861 = vpop.f32.mrf.mxu0
      %862 = vmatprep.mubr.bf16.mxu0 0
      %863 = vmatmul.mubr.bf16.gmra.mxu0 %v814
      %v864 = vpop.f32.mrf.mxu0
      %v865 = vadd.f32 0.0, %v864
      %v866 = vpop.f32.mrf.mxu0
      %v867 = vpop.f32.mrf.mxu0
      %v868 = vadd.f32 0.0, %v867
      %v869 = vpop.f32.mrf.mxu0
      %870 = vmatprep.mubr.bf16.mxu0 0
      %871 = vmatmul.mubr.bf16.gmra.mxu0 %v817
      %v872 = vpop.f32.mrf.mxu0
      %v873 = vadd.f32 0.0, %v872
      %v874 = vpop.f32.mrf.mxu0
      %v875 = vpop.f32.mrf.mxu0
      %v876 = vpop.f32.mrf.mxu0
      %877 = vdwg.mxu0
      %v878 = vadd.f32 %v794, %v857
      %v879 = vadd.f32 %v795, %v860
      %v880 = vadd.f32 %v796, %v865
      %v881 = vadd.f32 %v797, %v868
      %v882 = vadd.f32 %v798, %v873
      %v883 = vld [vmem:[%s272] sm:$0xf]
      %v884 = vld [vmem:[%s272 + $0x4] sm:$0xf]
      %v885 = vld [vmem:[%s272 + $0x8] sm:$0xf]
      %v886 = vld [vmem:[%s272 + $0xc] sm:$0xf]
      %v887 = vld [vmem:[%s272 + $0x10] sm:$0xf]
      %s888 = scalar_lea.vmem %s3, 12
      %v889 = vld [vmem:[%s888] sm:$0x3]
      %v895 = vunpack.c.l.b16 %v883
      %v896 = vunpack.c.l.b16 %v884
      %v897 = vunpack.c.l.b16 %v885
      %v898 = vunpack.c.l.b16 %v886
      %v899 = vunpack.c.l.b16 %v887
      %v900 = vpack.c.b16 %v896, %v895
      %v901 = vpack.c.b16 %v898, %v897
      %v902 = vpack.c.b16 %v899, %v899
      %v904 = vsel %vm307, %v900, 0
      %v907 = vsel %vm307, %v901, 0
      %v910 = vsel %vm307, %v902, 0
      %v913 = vsel %vm317, %v889, 0
      %915 = vmatprep.subr.bf16.mxu0 0
      %916 = vmatpush1.bf16.msra.mxu0 0
      %917 = vmatprep.subr.bf16.mxu0 0
      %918 = vmatpush1.bf16.msra.mxu0 0
      %919 = vmatprep.subr.bf16.mxu0 0
      %920 = vmatpush1.bf16.msra.mxu0 0
      %921 = vmatprep.subr.bf16.mxu0 0
      %922 = vmatpush1.bf16.msra.mxu0 0
      %923 = vmatprep.subr.bf16.mxu0 0
      %924 = vmatpush1.bf16.msra.mxu0 0
      %925 = vmatprep.subr.bf16.mxu0 0
      %926 = vmatpush1.bf16.msra.mxu0 0
      %927 = vmatprep.subr.bf16.mxu0 0
      %928 = vmatpush1.bf16.msra.mxu0 0
      %929 = vmatprep.subr.bf16.mxu0 0
      %930 = vmatpush1.bf16.msra.mxu0 %v913
      %931 = vmatprep.subr.bf16.mxu0 0
      %932 = vmatpush2.bf16.msra.mxu0 0
      %933 = vmatprep.subr.bf16.mxu0 0
      %934 = vmatpush2.bf16.msra.mxu0 0
      %935 = vmatprep.subr.bf16.mxu0 0
      %936 = vmatpush2.bf16.msra.mxu0 0
      %937 = vmatprep.subr.bf16.mxu0 0
      %938 = vmatpush2.bf16.msra.mxu0 0
      %939 = vmatprep.subr.bf16.mxu0 0
      %940 = vmatpush2.bf16.msra.mxu0 0
      %941 = vmatprep.subr.bf16.mxu0 0
      %942 = vmatpush2.bf16.msra.mxu0 0
      %943 = vmatprep.subr.bf16.mxu0 0
      %944 = vmatpush2.bf16.msra.mxu0 0
      %945 = vmatprep.subr.bf16.mxu0 0
      %946 = vmatpush2.bf16.msra.mxu0 0
      %947 = vmatprep.mubr.bf16.mxu0 0
      %948 = vmatmul.mubr.bf16.gmra.mxu0 %v904
      %v949 = vpop.f32.mrf.mxu0
      %v950 = vadd.f32 0.0, %v949
      %v951 = vpop.f32.mrf.mxu0
      %v952 = vpop.f32.mrf.mxu0
      %v953 = vadd.f32 0.0, %v952
      %v954 = vpop.f32.mrf.mxu0
      %955 = vmatprep.mubr.bf16.mxu0 0
      %956 = vmatmul.mubr.bf16.gmra.mxu0 %v907
      %v957 = vpop.f32.mrf.mxu0
      %v958 = vadd.f32 0.0, %v957
      %v959 = vpop.f32.mrf.mxu0
      %v960 = vpop.f32.mrf.mxu0
      %v961 = vadd.f32 0.0, %v960
      %v962 = vpop.f32.mrf.mxu0
      %963 = vmatprep.mubr.bf16.mxu0 0
      %964 = vmatmul.mubr.bf16.gmra.mxu0 %v910
      %v965 = vpop.f32.mrf.mxu0
      %v966 = vadd.f32 0.0, %v965
      %v967 = vpop.f32.mrf.mxu0
      %v968 = vpop.f32.mrf.mxu0
      %v969 = vpop.f32.mrf.mxu0
      %970 = vdwg.mxu0
      %v971 = vadd.f32 %v878, %v950
      %v972 = vadd.f32 %v879, %v953
      %v973 = vadd.f32 %v880, %v958
      %v974 = vadd.f32 %v881, %v961
      %v975 = vadd.f32 %v882, %v966
      %v976 = vld [vmem:[%s272] sm:$0xf]
      %v977 = vld [vmem:[%s272 + $0x4] sm:$0xf]
      %v978 = vld [vmem:[%s272 + $0x8] sm:$0xf]
      %v979 = vld [vmem:[%s272 + $0xc] sm:$0xf]
      %v980 = vld [vmem:[%s272 + $0x10] sm:$0xf]
      %v981 = vld [vmem:[%s272 + $0x14] sm:$0x1]
      %s982 = scalar_lea.vmem %s3, 14
      %v983 = vld [vmem:[%s982] sm:$0x3]
      %v990 = vunpack.c.l.b16 %v976
      %v991 = vunpack.c.l.b16 %v977
      %v992 = vunpack.c.l.b16 %v978
      %v993 = vunpack.c.l.b16 %v979
      %v994 = vunpack.c.l.b16 %v980
      %v995 = vunpack.c.l.b16 %v981
      %v996 = vpack.c.b16 %v991, %v990
      %v997 = vpack.c.b16 %v993, %v992
      %v998 = vpack.c.b16 %v995, %v994
      %v1000 = vshrl.u32 %v996, 16
      %v1002 = vshll.u32 %v996, 16
      %v1004 = vrot.slane %v1002, 1
      %v1005 = vor.u32 %v1000, %v1004
      %v1007 = vshll.u32 %v997, 16
      %v1009 = vrot.slane %v1007, 1
      %v1010 = vsel %vm405, %v1005, %v1009
      %v1011 = vshrl.u32 %v997, 16
      %v1013 = vor.u32 %v1011, %v1009
      %v1015 = vshll.u32 %v998, 16
      %v1017 = vrot.slane %v1015, 1
      %v1018 = vsel %vm405, %v1013, %v1017
      %v1019 = vshrl.u32 %v998, 16
      %v1021 = vor.u32 %v1019, %v1017
      %v1023 = vsel %vm307, %v1010, 0
      %v1026 = vsel %vm307, %v1018, 0
      %v1029 = vsel %vm307, %v1021, 0
      %v1032 = vsel %vm317, %v983, 0
      %1034 = vmatprep.subr.bf16.mxu0 0
      %1035 = vmatpush1.bf16.msra.mxu0 0
      %1036 = vmatprep.subr.bf16.mxu0 0
      %1037 = vmatpush1.bf16.msra.mxu0 0
      %1038 = vmatprep.subr.bf16.mxu0 0
      %1039 = vmatpush1.bf16.msra.mxu0 0
      %1040 = vmatprep.subr.bf16.mxu0 0
      %1041 = vmatpush1.bf16.msra.mxu0 0
      %1042 = vmatprep.subr.bf16.mxu0 0
      %1043 = vmatpush1.bf16.msra.mxu0 0
      %1044 = vmatprep.subr.bf16.mxu0 0
      %1045 = vmatpush1.bf16.msra.mxu0 0
      %1046 = vmatprep.subr.bf16.mxu0 0
      %1047 = vmatpush1.bf16.msra.mxu0 0
      %1048 = vmatprep.subr.bf16.mxu0 0
      %1049 = vmatpush1.bf16.msra.mxu0 %v1032
      %1050 = vmatprep.subr.bf16.mxu0 0
      %1051 = vmatpush2.bf16.msra.mxu0 0
      %1052 = vmatprep.subr.bf16.mxu0 0
      %1053 = vmatpush2.bf16.msra.mxu0 0
      %1054 = vmatprep.subr.bf16.mxu0 0
      %1055 = vmatpush2.bf16.msra.mxu0 0
      %1056 = vmatprep.subr.bf16.mxu0 0
      %1057 = vmatpush2.bf16.msra.mxu0 0
      %1058 = vmatprep.subr.bf16.mxu0 0
      %1059 = vmatpush2.bf16.msra.mxu0 0
      %1060 = vmatprep.subr.bf16.mxu0 0
      %1061 = vmatpush2.bf16.msra.mxu0 0
      %1062 = vmatprep.subr.bf16.mxu0 0
      %1063 = vmatpush2.bf16.msra.mxu0 0
      %1064 = vmatprep.subr.bf16.mxu0 0
      %1065 = vmatpush2.bf16.msra.mxu0 0
      %1066 = vmatprep.mubr.bf16.mxu0 0
      %1067 = vmatmul.mubr.bf16.gmra.mxu0 %v1023
      %v1068 = vpop.f32.mrf.mxu0
      %v1069 = vadd.f32 0.0, %v1068
      %v1070 = vpop.f32.mrf.mxu0
      %v1071 = vpop.f32.mrf.mxu0
      %v1072 = vadd.f32 0.0, %v1071
      %v1073 = vpop.f32.mrf.mxu0
      %1074 = vmatprep.mubr.bf16.mxu0 0
      %1075 = vmatmul.mubr.bf16.gmra.mxu0 %v1026
      %v1076 = vpop.f32.mrf.mxu0
      %v1077 = vadd.f32 0.0, %v1076
      %v1078 = vpop.f32.mrf.mxu0
      %v1079 = vpop.f32.mrf.mxu0
      %v1080 = vadd.f32 0.0, %v1079
      %v1081 = vpop.f32.mrf.mxu0
      %1082 = vmatprep.mubr.bf16.mxu0 0
      %1083 = vmatmul.mubr.bf16.gmra.mxu0 %v1029
      %v1084 = vpop.f32.mrf.mxu0
      %v1085 = vadd.f32 0.0, %v1084
      %v1086 = vpop.f32.mrf.mxu0
      %v1087 = vpop.f32.mrf.mxu0
      %v1088 = vpop.f32.mrf.mxu0
      %1089 = vdwg.mxu0
      %v1090 = vadd.f32 %v971, %v1069
      %v1091 = vadd.f32 %v972, %v1072
      %v1092 = vadd.f32 %v973, %v1077
      %v1093 = vadd.f32 %v974, %v1080
      %v1094 = vadd.f32 %v975, %v1085
      %v1095 = vld [vmem:[%s272] sm:$0xe]
      %s1096 = scalar_lea.vmem %s3, 16
      %v1097 = vld [vmem:[%s1096] sm:$0x3]
      %v1099 = vunpack.c.l.b16 %v1095
      %v1100 = vpack.c.b16 %v991, %v1099
      %v1101 = vrot.slane %v1100, 1
      %v1102 = vrot.slane %v997, 1
      %v1103 = vsel %vm508, %v1101, %v1102
      %v1104 = vrot.slane %v998, 1
      %v1105 = vsel %vm508, %v1102, %v1104
      %v1107 = vsel %vm307, %v1103, 0
      %v1110 = vsel %vm307, %v1105, 0
      %v1113 = vsel %vm307, %v1104, 0
      %v1116 = vsel %vm317, %v1097, 0
      %1118 = vmatprep.subr.bf16.mxu0 0
      %1119 = vmatpush1.bf16.msra.mxu0 0
      %1120 = vmatprep.subr.bf16.mxu0 0
      %1121 = vmatpush1.bf16.msra.mxu0 0
      %1122 = vmatprep.subr.bf16.mxu0 0
      %1123 = vmatpush1.bf16.msra.mxu0 0
      %1124 = vmatprep.subr.bf16.mxu0 0
      %1125 = vmatpush1.bf16.msra.mxu0 0
      %1126 = vmatprep.subr.bf16.mxu0 0
      %1127 = vmatpush1.bf16.msra.mxu0 0
      %1128 = vmatprep.subr.bf16.mxu0 0
      %1129 = vmatpush1.bf16.msra.mxu0 0
      %1130 = vmatprep.subr.bf16.mxu0 0
      %1131 = vmatpush1.bf16.msra.mxu0 0
      %1132 = vmatprep.subr.bf16.mxu0 0
      %1133 = vmatpush1.bf16.msra.mxu0 %v1116
      %1134 = vmatprep.subr.bf16.mxu0 0
      %1135 = vmatpush2.bf16.msra.mxu0 0
      %1136 = vmatprep.subr.bf16.mxu0 0
      %1137 = vmatpush2.bf16.msra.mxu0 0
      %1138 = vmatprep.subr.bf16.mxu0 0
      %1139 = vmatpush2.bf16.msra.mxu0 0
      %1140 = vmatprep.subr.bf16.mxu0 0
      %1141 = vmatpush2.bf16.msra.mxu0 0
      %1142 = vmatprep.subr.bf16.mxu0 0
      %1143 = vmatpush2.bf16.msra.mxu0 0
      %1144 = vmatprep.subr.bf16.mxu0 0
      %1145 = vmatpush2.bf16.msra.mxu0 0
      %1146 = vmatprep.subr.bf16.mxu0 0
      %1147 = vmatpush2.bf16.msra.mxu0 0
      %1148 = vmatprep.subr.bf16.mxu0 0
      %1149 = vmatpush2.bf16.msra.mxu0 0
      %1150 = vmatprep.mubr.bf16.mxu0 0
      %1151 = vmatmul.mubr.bf16.gmra.mxu0 %v1107
      %v1152 = vpop.f32.mrf.mxu0
      %v1153 = vadd.f32 0.0, %v1152
      %v1154 = vpop.f32.mrf.mxu0
      %v1155 = vpop.f32.mrf.mxu0
      %v1156 = vadd.f32 0.0, %v1155
      %v1157 = vpop.f32.mrf.mxu0
      %1158 = vmatprep.mubr.bf16.mxu0 0
      %1159 = vmatmul.mubr.bf16.gmra.mxu0 %v1110
      %v1160 = vpop.f32.mrf.mxu0
      %v1161 = vadd.f32 0.0, %v1160
      %v1162 = vpop.f32.mrf.mxu0
      %v1163 = vpop.f32.mrf.mxu0
      %v1164 = vadd.f32 0.0, %v1163
      %v1165 = vpop.f32.mrf.mxu0
      %1166 = vmatprep.mubr.bf16.mxu0 0
      %1167 = vmatmul.mubr.bf16.gmra.mxu0 %v1113
      %v1168 = vpop.f32.mrf.mxu0
      %v1169 = vadd.f32 0.0, %v1168
      %v1170 = vpop.f32.mrf.mxu0
      %v1171 = vpop.f32.mrf.mxu0
      %v1172 = vpop.f32.mrf.mxu0
      %1173 = vdwg.mxu0
      %v1174 = vadd.f32 %v1090, %v1153
      %v1175 = vadd.f32 %v1091, %v1156
      %v1176 = vadd.f32 %v1092, %v1161
      %v1177 = vadd.f32 %v1093, %v1164
      %v1178 = vadd.f32 %v1094, %v1169
      %1179 = vst [vmem:[%s278] sm:$0xff] %v1174
      %1180 = vst [vmem:[%s278 + $0x8] sm:$0xff] %v1175
      %1181 = vst [vmem:[%s278 + $0x10] sm:$0xff] %v1176
      %1182 = vst [vmem:[%s278 + $0x18] sm:$0xff] %v1177
      %1183 = vst [vmem:[%s278 + $0x20] sm:$0xff] %v1178
      %p1184 = scmp.lt.s32.totalorder %s16, 15
      %s1185 = scalar_select %p1184, %s16, 15
      %s1186 = smul.addr %s1185, 5
      %s1187 = smul.addr %s1186, 8
      %s1188 = scalar_lea.vmem %s5, %s1187
      // Predicated region
      $region41: #{_conv_ann_forward.1} parent=39 // pred_check
        %p1189 = pneg %p158
      $region42: #{_conv_ann_forward.1} parent=39 // pred_check_branch
        %1191 = sbr.rel (%p1189) target = $region44
      $region43: #{_conv_ann_forward.1} parent=39 // pred_region
        _
      $region44: #{_conv_ann_forward.1} parent=39 // pred_fallthru
        _
    $region40: #{_conv_ann_forward.1} parent=5 // pred_fallthru
      _
    %p1192 = scmp.le.s32.totalorder 2, %s11
    // Predicated region
    $region45: #{_conv_ann_forward.1} parent=5 // pred_check
      %p1193 = pneg %p1192
    $region46: #{_conv_ann_forward.1} parent=5 // pred_check_branch
      %1195 = sbr.rel (%p1193) target = $region48
    $region47: #{_conv_ann_forward.1} parent=5 // pred_region
      %s1196 = ssub.s32 %s11, 2
      // Predicated region
      $region49: #{_conv_ann_forward.1} parent=47 // pred_check
        %p1197 = pneg %p164
      $region50: #{_conv_ann_forward.1} parent=47 // pred_check_branch
        %1199 = sbr.rel (%p1197) target = $region52
      $region51: #{_conv_ann_forward.1} parent=47 // pred_region
        %p1200 = scmp.lt.s32.totalorder %s17, 15
        %s1201 = scalar_select %p1200, %s17, 15
        %s1202 = smul.addr %s1201, 5
        %s1203 = smul.addr %s1202, 8
        %s1204 = scalar_lea.vmem %s5, %s1203
      $region52: #{_conv_ann_forward.1} parent=47 // pred_fallthru
        _
    $region48: #{_conv_ann_forward.1} parent=5 // pred_fallthru
      _
  $region6: #{_conv_ann_forward.1} parent=0 // loop_footer
    %s15 = sadd.s32 1, %s11
  $region7: #{_conv_ann_forward.1} parent=0 // loop_footer_branch
    %10 = sbr.rel target = $region3
  $region8: #{_conv_ann_forward.1} parent=0 // loop_exit
    _

</llo_original>
